<compile_context>
chip_gen: v6e
topology: v6e:2x2x1
jax: 0.10.0
libtpu: 0.0.40
codegen_flags: <defaults>
</compile_context>

<pallas_src>
import jax
import jax.numpy as jnp
from jax import lax
from jax.experimental import pallas as pl
from jax.experimental.pallas import tpu as pltpu

# ----------------- small hyper-parameters (same structure as CompactEEGNet) -----------------
B = 2
NUM_CHANNEL = 8      # original 63
NUM_CLASSES = 16     # original 1000
SIG_LEN = 17         # original 125  (odd -> conv1 keeps the time length, padding=len//2)
F1 = 4               # original 14
D = 2                # original 11
F2 = D * F1          # original 154 (= d * f1)
T = 64               # original 250 (so that f2 * (T//4//8) == fc.in_features)
SEP_K = 5            # separable-conv temporal kernel length (odd -> keeps width)
# TODO(synk): the PyTorch module uses self.separable_conv without defining it in __init__
# (and uses F.normalize without importing F); we implement the standard EEGNet separable
# conv (depthwise temporal kernel SEP_K, 'same' zero padding, no bias + pointwise 1x1 to
# F2 channels, no bias) and torch.nn.functional.normalize semantics.  Dropout is identity
# in eval mode.

PAD1 = SIG_LEN // 2
PAD_S = SEP_K // 2
TP = T + 2 * PAD1          # time length after conv1 'same' zero padding
TP1 = TP + 1               # + constant-1 column that carries the stage-1 bias
T1 = T // 4                # after avgpool1
TPP = T1 + 2 * PAD_S       # pooled length incl. zero pad for the separable temporal conv
T2 = T1 // 8               # after avgpool2
FEAT = F2 * T2             # fc in_features (original: 154 * 7 = 1078)
NC_PAD = 128               # fc output padded to a full lane width for a dense store
BP = ((B + 7) // 8) * 8    # batch rows padded to a sublane multiple -> aligned slab slices
BN_EPS = 1e-5


def _elu(v):
    # Clamp the exp argument (review item): keeps the unselected branch finite.
    return jnp.where(v > 0, v, jnp.exp(jnp.minimum(v, 0.0)) - 1.0)


def _avgpool_matrix(n_in, window, pad_out=0):
    """(n_in, n_in//window + 2*pad_out) average-pool matrix; the optional zero columns on
    both sides produce an already zero-padded pooled output (for the next conv)."""
    n_out = n_in // window
    r = jnp.arange(n_in)[:, None]
    c = jnp.arange(n_out + 2 * pad_out)[None, :]
    inside = (c >= pad_out) & (c < pad_out + n_out)
    hit = inside & ((r // window) == (c - pad_out))
    return jnp.where(hit, 1.0 / window, 0.0).astype(jnp.float32)


# ------------------------------------ Pallas kernel ------------------------------------
def compact_eegnet_kernel(x_ref, wk_ref, tband_ref, comb_ref,
                          c3_ref, p2_ref, wfc_ref, bfc_ref, o_ref):
    # Stage 1a: channel/depth mix (tiny f32 matmul).  Rows are (e, batch-padded-to-BP) so
    # every per-e slab below is an aligned (BP, TP1) block; the last column is a constant 1
    # that later multiplies the bias row of tband (bias fold, no extra operand).
    mix = jnp.dot(wk_ref[...], x_ref[...],
                  preferred_element_type=jnp.float32)                 # (F2*BP, TP1)

    # Stages 1b + 2 fused per input channel e (static unroll, F2 iterations):
    #   z_e  = ELU(conv1/bn1/depthwise/bn2 output for channel e)        (BP, T)
    #   h   += z_e @ comb[e]   (avgpool1 * sepconv * bn3-scale fused)   (BP, F2*T1)
    h = jnp.zeros((BP, F2 * T1), jnp.float32)
    for e in range(F2):
        me = mix[e * BP:(e + 1) * BP, :].astype(jnp.bfloat16)          # aligned slab
        z = jnp.dot(me, tband_ref[e], preferred_element_type=jnp.float32)   # (BP, T)
        z = _elu(z)
        h = h + jnp.dot(z.astype(jnp.bfloat16), comb_ref[e],
                        preferred_element_type=jnp.float32)            # (BP, F2*T1)

    # bn3 shift + ELU.
    h = _elu(h + c3_ref[...])

    # avgpool2 (window 8); result equals the channel-major flatten x.view(B, -1).
    flat = jnp.dot(h, p2_ref[...], preferred_element_type=jnp.float32)       # (BP, FEAT)

    # fc (output padded to 128 lanes -> lane-dense store) + F.normalize(dim=1).
    y = jnp.dot(flat, wfc_ref[...], preferred_element_type=jnp.float32) + bfc_ref[...]
    # 1/max(||y||, 1e-12) == rsqrt(max(sum(y^2), 1e-24)); padded lanes are exact zeros.
    inv = lax.rsqrt(jnp.maximum(jnp.sum(y * y, axis=1, keepdims=True), 1e-24))
    o_ref[...] = y * inv


# --------------------------- parameters + host-side folding ---------------------------
def make_params(key):
    ks = jax.random.split(key, 20)
    n = lambda k, shape, s=0.1: s * jax.random.normal(k, shape, jnp.float32)
    # conv1
    w1 = n(ks[0], (F1, SIG_LEN))
    b1 = n(ks[1], (F1,))
    g1, be1 = 1.0 + n(ks[2], (F1,)), n(ks[3], (F1,))
    rm1, rv1 = n(ks[4], (F1,)), 1.0 + jnp.abs(n(ks[5], (F1,)))
    # depthwise_conv  (torch weight (D*F1, 1, C, 1) stored here as (F1, D, C))
    wd = n(ks[6], (F1, D, NUM_CHANNEL))
    bd = n(ks[7], (F1 * D,))
    g2, be2 = 1.0 + n(ks[8], (F1 * D,)), n(ks[9], (F1 * D,))
    rm2, rv2 = n(ks[10], (F1 * D,)), 1.0 + jnp.abs(n(ks[11], (F1 * D,)))
    # separable conv (depthwise temporal + pointwise 1x1, no bias)
    pdep = n(ks[12], (F1, D, SEP_K))
    ppw = n(ks[13], (F2, F1 * D))
    g3, be3 = 1.0 + n(ks[14], (F2,)), n(ks[15], (F2,))
    rm3, rv3 = n(ks[16], (F2,)), 1.0 + jnp.abs(n(ks[17], (F2,)))
    # fc
    wfc = n(ks[18], (NUM_CLASSES, FEAT))
    bfc = n(ks[19], (NUM_CLASSES,))

    # Fold conv bias + eval-mode BatchNorm into per-channel affine (exact math).
    s1 = g1 / jnp.sqrt(rv1 + BN_EPS)
    a1, c1 = s1, s1 * (b1 - rm1) + be1
    s2 = g2 / jnp.sqrt(rv2 + BN_EPS)
    a2, c2 = s2, s2 * (bd - rm2) + be2
    s3 = g3 / jnp.sqrt(rv3 + BN_EPS)
    a3, c3 = s3, -s3 * rm3 + be3

    # ----------- fused kernel operands (parameter-only, built once) -----------
    wde2 = wd.reshape(F2, NUM_CHANNEL)                          # channel mix per out-ch e
    a1e, c1e = jnp.repeat(a1, D), jnp.repeat(c1, D)
    w1e = jnp.repeat(w1, D, axis=0)                             # (F2, SIG_LEN)
    scale_e = a2 * a1e                                          # bn2*bn1 scale per e
    bias2 = a2 * c1e * wde2.sum(axis=1) + c2                    # conv/bn bias per e

    # Stage-1a operand: channel/depth mix x I_B (kron so per-e slabs land on aligned
    # BP-row blocks) + trailing all-ones column injecting the constant-1 "time step".
    eye_pad = jnp.zeros((BP, B), jnp.float32).at[:B, :].set(jnp.eye(B, dtype=jnp.float32))
    wk_main = jnp.einsum('ec,pb->epcb', wde2, eye_pad).reshape(F2 * BP, NUM_CHANNEL * B)
    ones_col = jnp.tile(jnp.concatenate([jnp.ones((B,), jnp.float32),
                                         jnp.zeros((BP - B,), jnp.float32)]), F2)
    wk = jnp.concatenate([wk_main, ones_col[:, None]], axis=1)  # (F2*BP, C*B+1), f32, tiny

    # Stage-1b operand: per-e temporal band (conv1 kernel with bn scales folded) plus an
    # extra last row holding bias2 (multiplied by the constant-1 column of `mix`).
    kk = jnp.arange(TP)[:, None] - jnp.arange(T)[None, :]       # (TP, T)
    valid = (kk >= 0) & (kk < SIG_LEN)
    tb = jnp.where(valid[None], w1e[:, jnp.clip(kk, 0, SIG_LEN - 1)], 0.0)
    tb = scale_e[:, None, None] * tb                            # (F2, TP, T)
    bias_row = jnp.broadcast_to(bias2[:, None, None], (F2, 1, T))
    tband = jnp.concatenate([tb, bias_row], axis=1).astype(jnp.bfloat16)   # (F2, TP1, T)

    # Stage-2 operand: avgpool1 * depthwise-temporal sepconv * pointwise 1x1 * bn3 scale,
    # fused per input channel e: comb[e] maps (T,) -> (F2*T1,).
    p1 = _avgpool_matrix(T, 4, pad_out=PAD_S)                   # (T, TPP)
    kk3 = jnp.arange(TPP)[:, None] - jnp.arange(T1)[None, :]
    valid3 = (kk3 >= 0) & (kk3 < SEP_K)
    pd = pdep.reshape(F2, SEP_K)
    db = jnp.where(valid3[None], pd[:, jnp.clip(kk3, 0, SEP_K - 1)], 0.0)   # (F2, TPP, T1)
    m = jnp.einsum('tp,epu->etu', p1, db)                       # (F2, T, T1)
    pw_s = ppw * a3[:, None]                                    # (F2_out, F2_in) * bn3 scale
    comb = jnp.einsum('etu,oe->etou', m, pw_s).reshape(F2, T, F2 * T1).astype(jnp.bfloat16)

    c3row = jnp.repeat(c3, T1)[None, :]                         # (1, F2*T1) bn3 shift
    p2big = jnp.kron(jnp.eye(F2, dtype=jnp.float32), _avgpool_matrix(T1, 8))  # (F2*T1, FEAT)
    wfc_pad = jnp.zeros((FEAT, NC_PAD), jnp.float32).at[:, :NUM_CLASSES].set(wfc.T)
    bfc_pad = jnp.zeros((1, NC_PAD), jnp.float32).at[:, :NUM_CLASSES].set(bfc)

    return dict(
        # raw (torch-equivalent, BN-folded) params for the pure-JAX reference
        w1=w1, a1=a1, c1=c1, wd=wd, a2=a2, c2=c2, pdep=pdep, ppw=ppw,
        a3=a3, c3=c3, wfc=wfc, bfc=bfc,
        # fused kernel operands
        wk=wk, tband=tband, comb=comb, c3row=c3row, p2big=p2big,
        wfc_pad=wfc_pad, bfc_pad=bfc_pad,
    )


# ------------------------------------ wrapper ------------------------------------
@jax.jit
def compact_eegnet_forward(x, params):
    # Layout glue only: 'same' zero padding of the time axis for conv1, channel-major
    # (c, b) row ordering to match wk's kron structure, plus the constant-1 corner that
    # drives the bias fold.
    xp = jnp.pad(x, ((0, 0), (0, 0), (PAD1, PAD1)))                     # (B, C, TP)
    xcb = jnp.transpose(xp, (1, 0, 2)).reshape(NUM_CHANNEL * B, TP)     # (C*B, TP)
    x_aug = jnp.zeros((NUM_CHANNEL * B + 1, TP1), jnp.float32)
    x_aug = x_aug.at[:NUM_CHANNEL * B, :TP].set(xcb)
    x_aug = x_aug.at[NUM_CHANNEL * B, TP].set(1.0)

    vmem = lambda: pl.BlockSpec(memory_space=pltpu.MemorySpace.VMEM)
    out = pl.pallas_call(
        compact_eegnet_kernel,
        out_shape=jax.ShapeDtypeStruct((BP, NC_PAD), jnp.float32),
        in_specs=[vmem() for _ in range(8)],
        out_specs=vmem(),
    )(x_aug, params["wk"], params["tband"], params["comb"],
      params["c3row"], params["p2big"], params["wfc_pad"], params["bfc_pad"])
    return out[:B, :NUM_CLASSES]


# --------------------------- pure-JAX reference (mirrors PyTorch) ---------------------------
def reference_forward(x, p):
    """Pure-JAX reference mirroring the PyTorch forward (eval mode), full float32."""
    xp = jnp.pad(x, ((0, 0), (0, 0), (PAD1, PAD1)))
    cols = jnp.stack([xp[:, :, k:k + T] for k in range(SIG_LEN)], axis=-1)      # (B,C,T,K)
    out1 = jnp.einsum('bctk,fk->bfct', cols, p['w1'])
    out1 = out1 * p['a1'][None, :, None, None] + p['c1'][None, :, None, None]
    out2 = jnp.einsum('fdc,bfct->bfdt', p['wd'], out1).reshape(B, F1 * D, T)
    out2 = out2 * p['a2'].reshape(1, F1 * D, 1) + p['c2'].reshape(1, F1 * D, 1)
    out2 = _elu(out2)
    out2 = out2.reshape(B, F1 * D, T1, 4).mean(-1)
    xp2 = jnp.pad(out2, ((0, 0), (0, 0), (PAD_S, PAD_S)))
    cols2 = jnp.stack([xp2[:, :, k:k + T1] for k in range(SEP_K)], axis=-1)     # (B,DF,T1,K)
    out3 = jnp.einsum('bctk,ck->bct', cols2, p['pdep'].reshape(F1 * D, SEP_K))
    out4 = jnp.einsum('ec,bct->bet', p['ppw'], out3)
    out4 = out4 * p['a3'].reshape(1, F2, 1) + p['c3'].reshape(1, F2, 1)
    out4 = _elu(out4)
    out5 = out4.reshape(B, F2, T2, 8).mean(-1)
    flat = out5.reshape(B, FEAT)
    y = flat @ p['wfc'].T + p['bfc'][None, :]
    nrm = jnp.sqrt(jnp.sum(y * y, axis=1, keepdims=True))
    return y / jnp.maximum(nrm, 1e-12)


if __name__ == "__main__":
    key = jax.random.PRNGKey(0)
    kx, kp = jax.random.split(key)
    x = jax.random.normal(kx, (B, NUM_CHANNEL, T), jnp.float32)
    params = make_params(kp)

    out = compact_eegnet_forward(x, params)
    out = jax.block_until_ready(out)

    ref = reference_forward(x, params)
    assert out.shape == (B, NUM_CLASSES)
    err = float(jnp.max(jnp.abs(out - ref)))
    # tband/comb are stored in bf16 (per the performance review), so the tolerance is looser
    # than a pure-f32 check; estimated worst-case output error from bf16 rounding is ~1e-3.
    assert bool(jnp.allclose(out, ref, atol=5e-3, rtol=1e-2)), f"max abs diff {err}"
    print("KERNEL_OK")
</pallas_src>

<mosaic_0001>
module attributes {stable_mosaic.version = 11 : i64} {
  func.func @compact_eegnet_kernel(%arg0: memref<17x81xf32, #tpu.memory_space<vmem>>, %arg1: memref<64x17xf32, #tpu.memory_space<vmem>>, %arg2: memref<8x81x64xbf16, #tpu.memory_space<vmem>>, %arg3: memref<8x64x128xbf16, #tpu.memory_space<vmem>>, %arg4: memref<1x128xf32, #tpu.memory_space<vmem>>, %arg5: memref<128x16xf32, #tpu.memory_space<vmem>>, %arg6: memref<16x128xf32, #tpu.memory_space<vmem>>, %arg7: memref<1x128xf32, #tpu.memory_space<vmem>>, %arg8: memref<8x128xf32, #tpu.memory_space<vmem>>) attributes {dimension_semantics = [], scalar_prefetch = 0 : i64, scratch_operands = 0 : i64, tpu.core_type = #tpu.core_type<tc>} {
    %c0 = arith.constant 0 : index
    %c0_0 = arith.constant 0 : index
    %0 = vector.load %arg1[%c0, %c0_0] : memref<64x17xf32, #tpu.memory_space<vmem>>, vector<64x17xf32>
    %c0_1 = arith.constant 0 : index
    %c0_2 = arith.constant 0 : index
    %1 = vector.load %arg0[%c0_1, %c0_2] : memref<17x81xf32, #tpu.memory_space<vmem>>, vector<17x81xf32>
    %cst = arith.constant dense<0.000000e+00> : vector<64x81xf32>
    %2 = tpu.matmul %0, %1, %cst {dimension_numbers = #tpu.dot_dimension_numbers<[1], [0], [0], [1], [0, 0, 1, 1], [], []>} : vector<64x17xf32>, vector<17x81xf32>, vector<64x81xf32> -> vector<64x81xf32>
    %cst_3 = arith.constant 0.000000e+00 : f32
    %3 = vector.broadcast %cst_3 : f32 to vector<8x128xf32>
    %4 = vector.extract_strided_slice %2 {offsets = [0, 0], sizes = [8, 81], strides = [1, 1]} : vector<64x81xf32> to vector<8x81xf32>
    %5 = arith.truncf %4 : vector<8x81xf32> to vector<8x81xbf16>
    %c0_4 = arith.constant 0 : index
    %c0_5 = arith.constant 0 : index
    %c0_6 = arith.constant 0 : index
    %6 = vector.load %arg2[%c0_4, %c0_5, %c0_6] : memref<8x81x64xbf16, #tpu.memory_space<vmem>>, vector<1x81x64xbf16>
    %7 = vector.shape_cast %6 : vector<1x81x64xbf16> to vector<81x64xbf16>
    %cst_7 = arith.constant dense<0.000000e+00> : vector<8x64xf32>
    %8 = tpu.matmul %5, %7, %cst_7 {dimension_numbers = #tpu.dot_dimension_numbers<[1], [0], [0], [1], [0, 0, 1, 1], [], []>} : vector<8x81xbf16>, vector<81x64xbf16>, vector<8x64xf32> -> vector<8x64xf32>
    %cst_8 = arith.constant 0.000000e+00 : f32
    %9 = vector.broadcast %cst_8 : f32 to vector<8x64xf32>
    %10 = arith.cmpf ogt, %8, %9 : vector<8x64xf32>
    %cst_9 = arith.constant 0.000000e+00 : f32
    %11 = vector.broadcast %cst_9 : f32 to vector<8x64xf32>
    %12 = arith.minimumf %8, %11 : vector<8x64xf32>
    %13 = math.exp %12 : vector<8x64xf32>
    %cst_10 = arith.constant 1.000000e+00 : f32
    %14 = vector.broadcast %cst_10 : f32 to vector<8x64xf32>
    %15 = arith.subf %13, %14 : vector<8x64xf32>
    %16 = arith.select %10, %8, %15 : vector<8x64xi1>, vector<8x64xf32>
    %17 = arith.truncf %16 : vector<8x64xf32> to vector<8x64xbf16>
    %c0_11 = arith.constant 0 : index
    %c0_12 = arith.constant 0 : index
    %c0_13 = arith.constant 0 : index
    %18 = vector.load %arg3[%c0_11, %c0_12, %c0_13] : memref<8x64x128xbf16, #tpu.memory_space<vmem>>, vector<1x64x128xbf16>
    %19 = vector.shape_cast %18 : vector<1x64x128xbf16> to vector<64x128xbf16>
    %cst_14 = arith.constant dense<0.000000e+00> : vector<8x128xf32>
    %20 = tpu.matmul %17, %19, %cst_14 {dimension_numbers = #tpu.dot_dimension_numbers<[1], [0], [0], [1], [0, 0, 1, 1], [], []>} : vector<8x64xbf16>, vector<64x128xbf16>, vector<8x128xf32> -> vector<8x128xf32>
    %21 = arith.addf %3, %20 : vector<8x128xf32>
    %22 = vector.extract_strided_slice %2 {offsets = [8, 0], sizes = [8, 81], strides = [1, 1]} : vector<64x81xf32> to vector<8x81xf32>
    %23 = arith.truncf %22 : vector<8x81xf32> to vector<8x81xbf16>
    %c1 = arith.constant 1 : index
    %c0_15 = arith.constant 0 : index
    %c0_16 = arith.constant 0 : index
    %24 = vector.load %arg2[%c1, %c0_15, %c0_16] : memref<8x81x64xbf16, #tpu.memory_space<vmem>>, vector<1x81x64xbf16>
    %25 = vector.shape_cast %24 : vector<1x81x64xbf16> to vector<81x64xbf16>
    %cst_17 = arith.constant dense<0.000000e+00> : vector<8x64xf32>
    %26 = tpu.matmul %23, %25, %cst_17 {dimension_numbers = #tpu.dot_dimension_numbers<[1], [0], [0], [1], [0, 0, 1, 1], [], []>} : vector<8x81xbf16>, vector<81x64xbf16>, vector<8x64xf32> -> vector<8x64xf32>
    %cst_18 = arith.constant 0.000000e+00 : f32
    %27 = vector.broadcast %cst_18 : f32 to vector<8x64xf32>
    %28 = arith.cmpf ogt, %26, %27 : vector<8x64xf32>
    %cst_19 = arith.constant 0.000000e+00 : f32
    %29 = vector.broadcast %cst_19 : f32 to vector<8x64xf32>
    %30 = arith.minimumf %26, %29 : vector<8x64xf32>
    %31 = math.exp %30 : vector<8x64xf32>
    %cst_20 = arith.constant 1.000000e+00 : f32
    %32 = vector.broadcast %cst_20 : f32 to vector<8x64xf32>
    %33 = arith.subf %31, %32 : vector<8x64xf32>
    %34 = arith.select %28, %26, %33 : vector<8x64xi1>, vector<8x64xf32>
    %35 = arith.truncf %34 : vector<8x64xf32> to vector<8x64xbf16>
    %c1_21 = arith.constant 1 : index
    %c0_22 = arith.constant 0 : index
    %c0_23 = arith.constant 0 : index
    %36 = vector.load %arg3[%c1_21, %c0_22, %c0_23] : memref<8x64x128xbf16, #tpu.memory_space<vmem>>, vector<1x64x128xbf16>
    %37 = vector.shape_cast %36 : vector<1x64x128xbf16> to vector<64x128xbf16>
    %cst_24 = arith.constant dense<0.000000e+00> : vector<8x128xf32>
    %38 = tpu.matmul %35, %37, %cst_24 {dimension_numbers = #tpu.dot_dimension_numbers<[1], [0], [0], [1], [0, 0, 1, 1], [], []>} : vector<8x64xbf16>, vector<64x128xbf16>, vector<8x128xf32> -> vector<8x128xf32>
    %39 = arith.addf %21, %38 : vector<8x128xf32>
    %40 = vector.extract_strided_slice %2 {offsets = [16, 0], sizes = [8, 81], strides = [1, 1]} : vector<64x81xf32> to vector<8x81xf32>
    %41 = arith.truncf %40 : vector<8x81xf32> to vector<8x81xbf16>
    %c2 = arith.constant 2 : index
    %c0_25 = arith.constant 0 : index
    %c0_26 = arith.constant 0 : index
    %42 = vector.load %arg2[%c2, %c0_25, %c0_26] : memref<8x81x64xbf16, #tpu.memory_space<vmem>>, vector<1x81x64xbf16>
    %43 = vector.shape_cast %42 : vector<1x81x64xbf16> to vector<81x64xbf16>
    %cst_27 = arith.constant dense<0.000000e+00> : vector<8x64xf32>
    %44 = tpu.matmul %41, %43, %cst_27 {dimension_numbers = #tpu.dot_dimension_numbers<[1], [0], [0], [1], [0, 0, 1, 1], [], []>} : vector<8x81xbf16>, vector<81x64xbf16>, vector<8x64xf32> -> vector<8x64xf32>
    %cst_28 = arith.constant 0.000000e+00 : f32
    %45 = vector.broadcast %cst_28 : f32 to vector<8x64xf32>
    %46 = arith.cmpf ogt, %44, %45 : vector<8x64xf32>
    %cst_29 = arith.constant 0.000000e+00 : f32
    %47 = vector.broadcast %cst_29 : f32 to vector<8x64xf32>
    %48 = arith.minimumf %44, %47 : vector<8x64xf32>
    %49 = math.exp %48 : vector<8x64xf32>
    %cst_30 = arith.constant 1.000000e+00 : f32
    %50 = vector.broadcast %cst_30 : f32 to vector<8x64xf32>
    %51 = arith.subf %49, %50 : vector<8x64xf32>
    %52 = arith.select %46, %44, %51 : vector<8x64xi1>, vector<8x64xf32>
    %53 = arith.truncf %52 : vector<8x64xf32> to vector<8x64xbf16>
    %c2_31 = arith.constant 2 : index
    %c0_32 = arith.constant 0 : index
    %c0_33 = arith.constant 0 : index
    %54 = vector.load %arg3[%c2_31, %c0_32, %c0_33] : memref<8x64x128xbf16, #tpu.memory_space<vmem>>, vector<1x64x128xbf16>
    %55 = vector.shape_cast %54 : vector<1x64x128xbf16> to vector<64x128xbf16>
    %cst_34 = arith.constant dense<0.000000e+00> : vector<8x128xf32>
    %56 = tpu.matmul %53, %55, %cst_34 {dimension_numbers = #tpu.dot_dimension_numbers<[1], [0], [0], [1], [0, 0, 1, 1], [], []>} : vector<8x64xbf16>, vector<64x128xbf16>, vector<8x128xf32> -> vector<8x128xf32>
    %57 = arith.addf %39, %56 : vector<8x128xf32>
    %58 = vector.extract_strided_slice %2 {offsets = [24, 0], sizes = [8, 81], strides = [1, 1]} : vector<64x81xf32> to vector<8x81xf32>
    %59 = arith.truncf %58 : vector<8x81xf32> to vector<8x81xbf16>
    %c3 = arith.constant 3 : index
    %c0_35 = arith.constant 0 : index
    %c0_36 = arith.constant 0 : index
    %60 = vector.load %arg2[%c3, %c0_35, %c0_36] : memref<8x81x64xbf16, #tpu.memory_space<vmem>>, vector<1x81x64xbf16>
    %61 = vector.shape_cast %60 : vector<1x81x64xbf16> to vector<81x64xbf16>
    %cst_37 = arith.constant dense<0.000000e+00> : vector<8x64xf32>
    %62 = tpu.matmul %59, %61, %cst_37 {dimension_numbers = #tpu.dot_dimension_numbers<[1], [0], [0], [1], [0, 0, 1, 1], [], []>} : vector<8x81xbf16>, vector<81x64xbf16>, vector<8x64xf32> -> vector<8x64xf32>
    %cst_38 = arith.constant 0.000000e+00 : f32
    %63 = vector.broadcast %cst_38 : f32 to vector<8x64xf32>
    %64 = arith.cmpf ogt, %62, %63 : vector<8x64xf32>
    %cst_39 = arith.constant 0.000000e+00 : f32
    %65 = vector.broadcast %cst_39 : f32 to vector<8x64xf32>
    %66 = arith.minimumf %62, %65 : vector<8x64xf32>
    %67 = math.exp %66 : vector<8x64xf32>
    %cst_40 = arith.constant 1.000000e+00 : f32
    %68 = vector.broadcast %cst_40 : f32 to vector<8x64xf32>
    %69 = arith.subf %67, %68 : vector<8x64xf32>
    %70 = arith.select %64, %62, %69 : vector<8x64xi1>, vector<8x64xf32>
    %71 = arith.truncf %70 : vector<8x64xf32> to vector<8x64xbf16>
    %c3_41 = arith.constant 3 : index
    %c0_42 = arith.constant 0 : index
    %c0_43 = arith.constant 0 : index
    %72 = vector.load %arg3[%c3_41, %c0_42, %c0_43] : memref<8x64x128xbf16, #tpu.memory_space<vmem>>, vector<1x64x128xbf16>
    %73 = vector.shape_cast %72 : vector<1x64x128xbf16> to vector<64x128xbf16>
    %cst_44 = arith.constant dense<0.000000e+00> : vector<8x128xf32>
    %74 = tpu.matmul %71, %73, %cst_44 {dimension_numbers = #tpu.dot_dimension_numbers<[1], [0], [0], [1], [0, 0, 1, 1], [], []>} : vector<8x64xbf16>, vector<64x128xbf16>, vector<8x128xf32> -> vector<8x128xf32>
    %75 = arith.addf %57, %74 : vector<8x128xf32>
    %76 = vector.extract_strided_slice %2 {offsets = [32, 0], sizes = [8, 81], strides = [1, 1]} : vector<64x81xf32> to vector<8x81xf32>
    %77 = arith.truncf %76 : vector<8x81xf32> to vector<8x81xbf16>
    %c4 = arith.constant 4 : index
    %c0_45 = arith.constant 0 : index
    %c0_46 = arith.constant 0 : index
    %78 = vector.load %arg2[%c4, %c0_45, %c0_46] : memref<8x81x64xbf16, #tpu.memory_space<vmem>>, vector<1x81x64xbf16>
    %79 = vector.shape_cast %78 : vector<1x81x64xbf16> to vector<81x64xbf16>
    %cst_47 = arith.constant dense<0.000000e+00> : vector<8x64xf32>
    %80 = tpu.matmul %77, %79, %cst_47 {dimension_numbers = #tpu.dot_dimension_numbers<[1], [0], [0], [1], [0, 0, 1, 1], [], []>} : vector<8x81xbf16>, vector<81x64xbf16>, vector<8x64xf32> -> vector<8x64xf32>
    %cst_48 = arith.constant 0.000000e+00 : f32
    %81 = vector.broadcast %cst_48 : f32 to vector<8x64xf32>
    %82 = arith.cmpf ogt, %80, %81 : vector<8x64xf32>
    %cst_49 = arith.constant 0.000000e+00 : f32
    %83 = vector.broadcast %cst_49 : f32 to vector<8x64xf32>
    %84 = arith.minimumf %80, %83 : vector<8x64xf32>
    %85 = math.exp %84 : vector<8x64xf32>
    %cst_50 = arith.constant 1.000000e+00 : f32
    %86 = vector.broadcast %cst_50 : f32 to vector<8x64xf32>
    %87 = arith.subf %85, %86 : vector<8x64xf32>
    %88 = arith.select %82, %80, %87 : vector<8x64xi1>, vector<8x64xf32>
    %89 = arith.truncf %88 : vector<8x64xf32> to vector<8x64xbf16>
    %c4_51 = arith.constant 4 : index
    %c0_52 = arith.constant 0 : index
    %c0_53 = arith.constant 0 : index
    %90 = vector.load %arg3[%c4_51, %c0_52, %c0_53] : memref<8x64x128xbf16, #tpu.memory_space<vmem>>, vector<1x64x128xbf16>
    %91 = vector.shape_cast %90 : vector<1x64x128xbf16> to vector<64x128xbf16>
    %cst_54 = arith.constant dense<0.000000e+00> : vector<8x128xf32>
    %92 = tpu.matmul %89, %91, %cst_54 {dimension_numbers = #tpu.dot_dimension_numbers<[1], [0], [0], [1], [0, 0, 1, 1], [], []>} : vector<8x64xbf16>, vector<64x128xbf16>, vector<8x128xf32> -> vector<8x128xf32>
    %93 = arith.addf %75, %92 : vector<8x128xf32>
    %94 = vector.extract_strided_slice %2 {offsets = [40, 0], sizes = [8, 81], strides = [1, 1]} : vector<64x81xf32> to vector<8x81xf32>
    %95 = arith.truncf %94 : vector<8x81xf32> to vector<8x81xbf16>
    %c5 = arith.constant 5 : index
    %c0_55 = arith.constant 0 : index
    %c0_56 = arith.constant 0 : index
    %96 = vector.load %arg2[%c5, %c0_55, %c0_56] : memref<8x81x64xbf16, #tpu.memory_space<vmem>>, vector<1x81x64xbf16>
    %97 = vector.shape_cast %96 : vector<1x81x64xbf16> to vector<81x64xbf16>
    %cst_57 = arith.constant dense<0.000000e+00> : vector<8x64xf32>
    %98 = tpu.matmul %95, %97, %cst_57 {dimension_numbers = #tpu.dot_dimension_numbers<[1], [0], [0], [1], [0, 0, 1, 1], [], []>} : vector<8x81xbf16>, vector<81x64xbf16>, vector<8x64xf32> -> vector<8x64xf32>
    %cst_58 = arith.constant 0.000000e+00 : f32
    %99 = vector.broadcast %cst_58 : f32 to vector<8x64xf32>
    %100 = arith.cmpf ogt, %98, %99 : vector<8x64xf32>
    %cst_59 = arith.constant 0.000000e+00 : f32
    %101 = vector.broadcast %cst_59 : f32 to vector<8x64xf32>
    %102 = arith.minimumf %98, %101 : vector<8x64xf32>
    %103 = math.exp %102 : vector<8x64xf32>
    %cst_60 = arith.constant 1.000000e+00 : f32
    %104 = vector.broadcast %cst_60 : f32 to vector<8x64xf32>
    %105 = arith.subf %103, %104 : vector<8x64xf32>
    %106 = arith.select %100, %98, %105 : vector<8x64xi1>, vector<8x64xf32>
    %107 = arith.truncf %106 : vector<8x64xf32> to vector<8x64xbf16>
    %c5_61 = arith.constant 5 : index
    %c0_62 = arith.constant 0 : index
    %c0_63 = arith.constant 0 : index
    %108 = vector.load %arg3[%c5_61, %c0_62, %c0_63] : memref<8x64x128xbf16, #tpu.memory_space<vmem>>, vector<1x64x128xbf16>
    %109 = vector.shape_cast %108 : vector<1x64x128xbf16> to vector<64x128xbf16>
    %cst_64 = arith.constant dense<0.000000e+00> : vector<8x128xf32>
    %110 = tpu.matmul %107, %109, %cst_64 {dimension_numbers = #tpu.dot_dimension_numbers<[1], [0], [0], [1], [0, 0, 1, 1], [], []>} : vector<8x64xbf16>, vector<64x128xbf16>, vector<8x128xf32> -> vector<8x128xf32>
    %111 = arith.addf %93, %110 : vector<8x128xf32>
    %112 = vector.extract_strided_slice %2 {offsets = [48, 0], sizes = [8, 81], strides = [1, 1]} : vector<64x81xf32> to vector<8x81xf32>
    %113 = arith.truncf %112 : vector<8x81xf32> to vector<8x81xbf16>
    %c6 = arith.constant 6 : index
    %c0_65 = arith.constant 0 : index
    %c0_66 = arith.constant 0 : index
    %114 = vector.load %arg2[%c6, %c0_65, %c0_66] : memref<8x81x64xbf16, #tpu.memory_space<vmem>>, vector<1x81x64xbf16>
    %115 = vector.shape_cast %114 : vector<1x81x64xbf16> to vector<81x64xbf16>
    %cst_67 = arith.constant dense<0.000000e+00> : vector<8x64xf32>
    %116 = tpu.matmul %113, %115, %cst_67 {dimension_numbers = #tpu.dot_dimension_numbers<[1], [0], [0], [1], [0, 0, 1, 1], [], []>} : vector<8x81xbf16>, vector<81x64xbf16>, vector<8x64xf32> -> vector<8x64xf32>
    %cst_68 = arith.constant 0.000000e+00 : f32
    %117 = vector.broadcast %cst_68 : f32 to vector<8x64xf32>
    %118 = arith.cmpf ogt, %116, %117 : vector<8x64xf32>
    %cst_69 = arith.constant 0.000000e+00 : f32
    %119 = vector.broadcast %cst_69 : f32 to vector<8x64xf32>
    %120 = arith.minimumf %116, %119 : vector<8x64xf32>
    %121 = math.exp %120 : vector<8x64xf32>
    %cst_70 = arith.constant 1.000000e+00 : f32
    %122 = vector.broadcast %cst_70 : f32 to vector<8x64xf32>
    %123 = arith.subf %121, %122 : vector<8x64xf32>
    %124 = arith.select %118, %116, %123 : vector<8x64xi1>, vector<8x64xf32>
    %125 = arith.truncf %124 : vector<8x64xf32> to vector<8x64xbf16>
    %c6_71 = arith.constant 6 : index
    %c0_72 = arith.constant 0 : index
    %c0_73 = arith.constant 0 : index
    %126 = vector.load %arg3[%c6_71, %c0_72, %c0_73] : memref<8x64x128xbf16, #tpu.memory_space<vmem>>, vector<1x64x128xbf16>
    %127 = vector.shape_cast %126 : vector<1x64x128xbf16> to vector<64x128xbf16>
    %cst_74 = arith.constant dense<0.000000e+00> : vector<8x128xf32>
    %128 = tpu.matmul %125, %127, %cst_74 {dimension_numbers = #tpu.dot_dimension_numbers<[1], [0], [0], [1], [0, 0, 1, 1], [], []>} : vector<8x64xbf16>, vector<64x128xbf16>, vector<8x128xf32> -> vector<8x128xf32>
    %129 = arith.addf %111, %128 : vector<8x128xf32>
    %130 = vector.extract_strided_slice %2 {offsets = [56, 0], sizes = [8, 81], strides = [1, 1]} : vector<64x81xf32> to vector<8x81xf32>
    %131 = arith.truncf %130 : vector<8x81xf32> to vector<8x81xbf16>
    %c7 = arith.constant 7 : index
    %c0_75 = arith.constant 0 : index
    %c0_76 = arith.constant 0 : index
    %132 = vector.load %arg2[%c7, %c0_75, %c0_76] : memref<8x81x64xbf16, #tpu.memory_space<vmem>>, vector<1x81x64xbf16>
    %133 = vector.shape_cast %132 : vector<1x81x64xbf16> to vector<81x64xbf16>
    %cst_77 = arith.constant dense<0.000000e+00> : vector<8x64xf32>
    %134 = tpu.matmul %131, %133, %cst_77 {dimension_numbers = #tpu.dot_dimension_numbers<[1], [0], [0], [1], [0, 0, 1, 1], [], []>} : vector<8x81xbf16>, vector<81x64xbf16>, vector<8x64xf32> -> vector<8x64xf32>
    %cst_78 = arith.constant 0.000000e+00 : f32
    %135 = vector.broadcast %cst_78 : f32 to vector<8x64xf32>
    %136 = arith.cmpf ogt, %134, %135 : vector<8x64xf32>
    %cst_79 = arith.constant 0.000000e+00 : f32
    %137 = vector.broadcast %cst_79 : f32 to vector<8x64xf32>
    %138 = arith.minimumf %134, %137 : vector<8x64xf32>
    %139 = math.exp %138 : vector<8x64xf32>
    %cst_80 = arith.constant 1.000000e+00 : f32
    %140 = vector.broadcast %cst_80 : f32 to vector<8x64xf32>
    %141 = arith.subf %139, %140 : vector<8x64xf32>
    %142 = arith.select %136, %134, %141 : vector<8x64xi1>, vector<8x64xf32>
    %143 = arith.truncf %142 : vector<8x64xf32> to vector<8x64xbf16>
    %c7_81 = arith.constant 7 : index
    %c0_82 = arith.constant 0 : index
    %c0_83 = arith.constant 0 : index
    %144 = vector.load %arg3[%c7_81, %c0_82, %c0_83] : memref<8x64x128xbf16, #tpu.memory_space<vmem>>, vector<1x64x128xbf16>
    %145 = vector.shape_cast %144 : vector<1x64x128xbf16> to vector<64x128xbf16>
    %cst_84 = arith.constant dense<0.000000e+00> : vector<8x128xf32>
    %146 = tpu.matmul %143, %145, %cst_84 {dimension_numbers = #tpu.dot_dimension_numbers<[1], [0], [0], [1], [0, 0, 1, 1], [], []>} : vector<8x64xbf16>, vector<64x128xbf16>, vector<8x128xf32> -> vector<8x128xf32>
    %147 = arith.addf %129, %146 : vector<8x128xf32>
    %c0_85 = arith.constant 0 : index
    %c0_86 = arith.constant 0 : index
    %148 = vector.load %arg4[%c0_85, %c0_86] : memref<1x128xf32, #tpu.memory_space<vmem>>, vector<1x128xf32>
    %149 = vector.broadcast %148 : vector<1x128xf32> to vector<8x128xf32>
    %150 = arith.addf %147, %149 : vector<8x128xf32>
    %cst_87 = arith.constant 0.000000e+00 : f32
    %151 = vector.broadcast %cst_87 : f32 to vector<8x128xf32>
    %152 = arith.cmpf ogt, %150, %151 : vector<8x128xf32>
    %cst_88 = arith.constant 0.000000e+00 : f32
    %153 = vector.broadcast %cst_88 : f32 to vector<8x128xf32>
    %154 = arith.minimumf %150, %153 : vector<8x128xf32>
    %155 = math.exp %154 : vector<8x128xf32>
    %cst_89 = arith.constant 1.000000e+00 : f32
    %156 = vector.broadcast %cst_89 : f32 to vector<8x128xf32>
    %157 = arith.subf %155, %156 : vector<8x128xf32>
    %158 = arith.select %152, %150, %157 : vector<8x128xi1>, vector<8x128xf32>
    %c0_90 = arith.constant 0 : index
    %c0_91 = arith.constant 0 : index
    %159 = vector.load %arg5[%c0_90, %c0_91] : memref<128x16xf32, #tpu.memory_space<vmem>>, vector<128x16xf32>
    %cst_92 = arith.constant dense<0.000000e+00> : vector<8x16xf32>
    %160 = tpu.matmul %158, %159, %cst_92 {dimension_numbers = #tpu.dot_dimension_numbers<[1], [0], [0], [1], [0, 0, 1, 1], [], []>} : vector<8x128xf32>, vector<128x16xf32>, vector<8x16xf32> -> vector<8x16xf32>
    %c0_93 = arith.constant 0 : index
    %c0_94 = arith.constant 0 : index
    %161 = vector.load %arg6[%c0_93, %c0_94] : memref<16x128xf32, #tpu.memory_space<vmem>>, vector<16x128xf32>
    %cst_95 = arith.constant dense<0.000000e+00> : vector<8x128xf32>
    %162 = tpu.matmul %160, %161, %cst_95 {dimension_numbers = #tpu.dot_dimension_numbers<[1], [0], [0], [1], [0, 0, 1, 1], [], []>} : vector<8x16xf32>, vector<16x128xf32>, vector<8x128xf32> -> vector<8x128xf32>
    %c0_96 = arith.constant 0 : index
    %c0_97 = arith.constant 0 : index
    %163 = vector.load %arg7[%c0_96, %c0_97] : memref<1x128xf32, #tpu.memory_space<vmem>>, vector<1x128xf32>
    %164 = vector.broadcast %163 : vector<1x128xf32> to vector<8x128xf32>
    %165 = arith.addf %162, %164 : vector<8x128xf32>
    %166 = arith.mulf %165, %165 : vector<8x128xf32>
    %cst_98 = arith.constant dense<0.000000e+00> : vector<8xf32>
    %167 = vector.multi_reduction <add>, %166, %cst_98 [1] : vector<8x128xf32> to vector<8xf32>
    %168 = vector.shape_cast %167 : vector<8xf32> to vector<8x1xf32>
    %cst_99 = arith.constant 1.000000e-24 : f32
    %169 = vector.broadcast %cst_99 : f32 to vector<8x1xf32>
    %170 = arith.maximumf %168, %169 : vector<8x1xf32>
    %171 = math.rsqrt %170 : vector<8x1xf32>
    %172 = vector.broadcast %171 : vector<8x1xf32> to vector<8x128xf32>
    %173 = arith.mulf %165, %172 : vector<8x128xf32>
    %c0_100 = arith.constant 0 : index
    %c0_101 = arith.constant 0 : index
    %174 = vector.load %arg8[%c0_100, %c0_101] : memref<8x128xf32, #tpu.memory_space<vmem>>, vector<8x128xf32>
    tpu.vector_store %arg8[%c0_100, %c0_101], %173 {strides = array<i32>} : memref<8x128xf32, #tpu.memory_space<vmem>>, vector<8x128xf32>,
    return
  }
}

</mosaic_0001>

<llo_original>
// kernel: compact_eegnet_forward.1
$region0: #{compact_eegnet_forward.1}
  #allocation0 [shape = 'u32[]', space=smem, size = 0x4, offset = 0x4, fixed_abs, tag = 'smem constant byte address 0x4 - core index']
  #allocation1 [shape = 'u32[144,128]{1,0:T(1,128)}', space=vmem, size = 0x12000, scoped, tag = 'internal scratch']
  %s0 = inlined_call_operand.vmem [shape: f32[17,81], index: 0, kind: input, shape index: {}]
  %s1 = inlined_call_operand.vmem [shape: f32[64,17], index: 1, kind: input, shape index: {}]
  %s2 = inlined_call_operand.vmem [shape: bf16[8,81,64], index: 2, kind: input, shape index: {}]
  %s3 = inlined_call_operand.vmem [shape: bf16[8,64,128], index: 3, kind: input, shape index: {}]
  %s4 = inlined_call_operand.vmem [shape: f32[1,128], index: 4, kind: input, shape index: {}]
  %s5 = inlined_call_operand.vmem [shape: f32[128,16], index: 5, kind: input, shape index: {}]
  %s6 = inlined_call_operand.vmem [shape: f32[16,128], index: 6, kind: input, shape index: {}]
  %s7 = inlined_call_operand.vmem [shape: f32[1,128], index: 7, kind: input, shape index: {}]
  %s8 = inlined_call_operand.vmem [shape: f32[8,128], index: 8, kind: output, shape index: {}]
  %s9 = sld [smem:[#allocation0]]
  $region42: #{compact_eegnet_forward.1} parent=0
    _
  %s11 = ssub.s32 1, %s9
  %s12 = scalar_select 0, %s11, %s9
  // Predicated region
  $region2: #{compact_eegnet_forward.1} parent=0 // pred_check
    _
  $region3: #{compact_eegnet_forward.1} parent=0 // pred_check_branch
    %14 = sbr.rel (0) target = $region5
  $region4: #{compact_eegnet_forward.1} parent=0 // pred_region
    _
  $region5: #{compact_eegnet_forward.1} parent=0 // pred_fallthru
    _
  // Predicated region
  $region6: #{compact_eegnet_forward.1} parent=0 // pred_check
    _
  $region7: #{compact_eegnet_forward.1} parent=0 // pred_check_branch
    %16 = sbr.rel (0) target = $region9
  $region8: #{compact_eegnet_forward.1} parent=0 // pred_region
    _
  $region9: #{compact_eegnet_forward.1} parent=0 // pred_fallthru
    _
  // Predicated region
  $region10: #{compact_eegnet_forward.1} parent=0 // pred_check
    _
  $region11: #{compact_eegnet_forward.1} parent=0 // pred_check_branch
    %18 = sbr.rel (0) target = $region13
  $region12: #{compact_eegnet_forward.1} parent=0 // pred_region
    _
  $region13: #{compact_eegnet_forward.1} parent=0 // pred_fallthru
    _
  // Predicated region
  $region14: #{compact_eegnet_forward.1} parent=0 // pred_check
    _
  $region15: #{compact_eegnet_forward.1} parent=0 // pred_check_branch
    %20 = sbr.rel (0) target = $region17
  $region16: #{compact_eegnet_forward.1} parent=0 // pred_region
    _
  $region17: #{compact_eegnet_forward.1} parent=0 // pred_fallthru
    _
  // Predicated region
  $region18: #{compact_eegnet_forward.1} parent=0 // pred_check
    _
  $region19: #{compact_eegnet_forward.1} parent=0 // pred_check_branch
    %22 = sbr.rel (0) target = $region21
  $region20: #{compact_eegnet_forward.1} parent=0 // pred_region
    _
  $region21: #{compact_eegnet_forward.1} parent=0 // pred_fallthru
    _
  // Predicated region
  $region22: #{compact_eegnet_forward.1} parent=0 // pred_check
    _
  $region23: #{compact_eegnet_forward.1} parent=0 // pred_check_branch
    %24 = sbr.rel (0) target = $region25
  $region24: #{compact_eegnet_forward.1} parent=0 // pred_region
    _
  $region25: #{compact_eegnet_forward.1} parent=0 // pred_fallthru
    _
  // Predicated region
  $region26: #{compact_eegnet_forward.1} parent=0 // pred_check
    _
  $region27: #{compact_eegnet_forward.1} parent=0 // pred_check_branch
    %26 = sbr.rel (0) target = $region29
  $region28: #{compact_eegnet_forward.1} parent=0 // pred_region
    _
  $region29: #{compact_eegnet_forward.1} parent=0 // pred_fallthru
    _
  // Predicated region
  $region30: #{compact_eegnet_forward.1} parent=0 // pred_check
    _
  $region31: #{compact_eegnet_forward.1} parent=0 // pred_check_branch
    %28 = sbr.rel (0) target = $region33
  $region32: #{compact_eegnet_forward.1} parent=0 // pred_region
    _
  $region33: #{compact_eegnet_forward.1} parent=0 // pred_fallthru
    _
  %v30 = vld [vmem:[%s1] sm:$0xff]
  %v31 = vld [vmem:[%s1 + $0x8] sm:$0xff]
  %v32 = vld [vmem:[%s1 + $0x10] sm:$0xff]
  %v33 = vld [vmem:[%s1 + $0x18] sm:$0xff]
  %v34 = vld [vmem:[%s1 + $0x20] sm:$0xff]
  %v35 = vld [vmem:[%s1 + $0x28] sm:$0xff]
  %v36 = vld [vmem:[%s1 + $0x30] sm:$0xff]
  %v37 = vld [vmem:[%s1 + $0x38] sm:$0xff]
  %v38 = vld [vmem:[%s0] sm:$0xff]
  %v39 = vld [vmem:[%s0 + $0x8] sm:$0xff]
  %v40 = vld [vmem:[%s0 + $0x10] sm:$0x1]
  %vm41 = vcmask 138240
  %v43 = vsel %vm41, %v30, 0
  %v46 = vsel %vm41, %v31, 0
  %v49 = vsel %vm41, %v32, 0
  %v52 = vsel %vm41, %v33, 0
  %v55 = vsel %vm41, %v34, 0
  %v58 = vsel %vm41, %v35, 0
  %v61 = vsel %vm41, %v36, 0
  %v64 = vsel %vm41, %v37, 0
  %vm66 = vcmask 1040384
  %v68 = vsel %vm66, %v40, 0
  %70 = vmatprep.subr.mxu0 0.0
  %71 = vmatpush1.msra.mxu0 0.0
  %72 = vmatprep.subr.mxu0 0.0
  %73 = vmatpush1.msra.mxu0 0.0
  %74 = vmatprep.subr.mxu0 0.0
  %75 = vmatpush1.msra.mxu0 0.0
  %76 = vmatprep.subr.mxu0 0.0
  %77 = vmatpush1.msra.mxu0 0.0
  %78 = vmatprep.subr.mxu0 0.0
  %79 = vmatpush1.msra.mxu0 0.0
  %80 = vmatprep.subr.mxu0 0.0
  %81 = vmatpush1.msra.mxu0 0.0
  %82 = vmatprep.subr.mxu0 0.0
  %83 = vmatpush1.msra.mxu0 0.0
  %84 = vmatprep.subr.mxu0 0.0
  %85 = vmatpush1.msra.mxu0 0.0
  %86 = vmatprep.subr.mxu0 0.0
  %87 = vmatpush1.msra.mxu0 0.0
  %88 = vmatprep.subr.mxu0 0.0
  %89 = vmatpush1.msra.mxu0 0.0
  %90 = vmatprep.subr.mxu0 0.0
  %91 = vmatpush1.msra.mxu0 0.0
  %92 = vmatprep.subr.mxu0 0.0
  %93 = vmatpush1.msra.mxu0 0.0
  %94 = vmatprep.subr.mxu0 0.0
  %95 = vmatpush1.msra.mxu0 0.0
  %96 = vmatprep.subr.mxu0 0.0
  %97 = vmatpush1.msra.mxu0 %v68
  %98 = vmatprep.subr.mxu0 0.0
  %99 = vmatpush1.msra.mxu0 %v39
  %100 = vmatprep.subr.mxu0 0.0
  %101 = vmatpush1.msra.mxu0 %v38
  %102 = vmatprep.subr.mxu0 0.0
  %103 = vmatpush2.msra.mxu0 0.0
  %104 = vmatprep.subr.mxu0 0.0
  %105 = vmatpush2.msra.mxu0 0.0
  %106 = vmatprep.subr.mxu0 0.0
  %107 = vmatpush2.msra.mxu0 0.0
  %108 = vmatprep.subr.mxu0 0.0
  %109 = vmatpush2.msra.mxu0 0.0
  %110 = vmatprep.subr.mxu0 0.0
  %111 = vmatpush2.msra.mxu0 0.0
  %112 = vmatprep.subr.mxu0 0.0
  %113 = vmatpush2.msra.mxu0 0.0
  %114 = vmatprep.subr.mxu0 0.0
  %115 = vmatpush2.msra.mxu0 0.0
  %116 = vmatprep.subr.mxu0 0.0
  %117 = vmatpush2.msra.mxu0 0.0
  %118 = vmatprep.subr.mxu0 0.0
  %119 = vmatpush2.msra.mxu0 0.0
  %120 = vmatprep.subr.mxu0 0.0
  %121 = vmatpush2.msra.mxu0 0.0
  %122 = vmatprep.subr.mxu0 0.0
  %123 = vmatpush2.msra.mxu0 0.0
  %124 = vmatprep.subr.mxu0 0.0
  %125 = vmatpush2.msra.mxu0 0.0
  %126 = vmatprep.subr.mxu0 0.0
  %127 = vmatpush2.msra.mxu0 0.0
  %128 = vmatprep.subr.mxu0 0.0
  %129 = vmatpush2.msra.mxu0 0.0
  %130 = vmatprep.subr.mxu0 0.0
  %131 = vmatpush2.msra.mxu0 0.0
  %132 = vmatprep.subr.mxu0 0.0
  %133 = vmatpush2.msra.mxu0 0.0
  %134 = vmatprep.mubr.f32.mxu0 0.0
  %135 = vmatmul.mubr.f32.gmra.mxu0 %v43
  %v136 = vpop.f32.mrf.mxu0
  %v137 = vadd.f32 0.0, %v136
  %v138 = vpop.f32.mrf.mxu0
  %139 = vmatprep.mubr.f32.mxu0 0.0
  %140 = vmatmul.mubr.f32.gmra.mxu0 %v46
  %v141 = vpop.f32.mrf.mxu0
  %v142 = vadd.f32 0.0, %v141
  %v143 = vpop.f32.mrf.mxu0
  %144 = vmatprep.mubr.f32.mxu0 0.0
  %145 = vmatmul.mubr.f32.gmra.mxu0 %v49
  %v146 = vpop.f32.mrf.mxu0
  %v147 = vadd.f32 0.0, %v146
  %v148 = vpop.f32.mrf.mxu0
  %149 = vmatprep.mubr.f32.mxu0 0.0
  %150 = vmatmul.mubr.f32.gmra.mxu0 %v52
  %v151 = vpop.f32.mrf.mxu0
  %v152 = vadd.f32 0.0, %v151
  %v153 = vpop.f32.mrf.mxu0
  %154 = vmatprep.mubr.f32.mxu0 0.0
  %155 = vmatmul.mubr.f32.gmra.mxu0 %v55
  %v156 = vpop.f32.mrf.mxu0
  %v157 = vadd.f32 0.0, %v156
  %v158 = vpop.f32.mrf.mxu0
  %159 = vmatprep.mubr.f32.mxu0 0.0
  %160 = vmatmul.mubr.f32.gmra.mxu0 %v58
  %v161 = vpop.f32.mrf.mxu0
  %v162 = vadd.f32 0.0, %v161
  %v163 = vpop.f32.mrf.mxu0
  %164 = vmatprep.mubr.f32.mxu0 0.0
  %165 = vmatmul.mubr.f32.gmra.mxu0 %v61
  %v166 = vpop.f32.mrf.mxu0
  %v167 = vadd.f32 0.0, %v166
  %v168 = vpop.f32.mrf.mxu0
  %169 = vmatprep.mubr.f32.mxu0 0.0
  %170 = vmatmul.mubr.f32.gmra.mxu0 %v64
  %v171 = vpop.f32.mrf.mxu0
  %v172 = vadd.f32 0.0, %v171
  %v173 = vpop.f32.mrf.mxu0
  %174 = vdwg.mxu0
  %v175 = vpack.c.bf16 %v137, %v137
  %v176 = vld [vmem:[%s2] sm:$0xf]
  %v177 = vld [vmem:[%s2 + $0x4] sm:$0xf]
  %v178 = vld [vmem:[%s2 + $0x8] sm:$0xf]
  %v179 = vld [vmem:[%s2 + $0xc] sm:$0xf]
  %v180 = vld [vmem:[%s2 + $0x10] sm:$0xf]
  %v181 = vld [vmem:[%s2 + $0x14] sm:$0xf]
  %v182 = vld [vmem:[%s2 + $0x18] sm:$0xf]
  %v183 = vld [vmem:[%s2 + $0x1c] sm:$0xf]
  %v184 = vld [vmem:[%s2 + $0x20] sm:$0xf]
  %v185 = vld [vmem:[%s2 + $0x24] sm:$0xf]
  %v186 = vld [vmem:[%s2 + $0x28] sm:$0x1]
  %v198 = vunpack.c.l.b16 %v176
  %v199 = vunpack.c.l.b16 %v177
  %v200 = vunpack.c.l.b16 %v178
  %v201 = vunpack.c.l.b16 %v179
  %v202 = vunpack.c.l.b16 %v180
  %v203 = vunpack.c.l.b16 %v181
  %v204 = vunpack.c.l.b16 %v182
  %v205 = vunpack.c.l.b16 %v183
  %v206 = vunpack.c.l.b16 %v184
  %v207 = vunpack.c.l.b16 %v185
  %v208 = vunpack.c.l.b16 %v186
  %v209 = vpack.c.b16 %v199, %v198
  %v210 = vpack.c.b16 %v201, %v200
  %v211 = vpack.c.b16 %v203, %v202
  %v212 = vpack.c.b16 %v205, %v204
  %v213 = vpack.c.b16 %v207, %v206
  %v214 = vpack.c.b16 %v208, %v208
  %vm220 = vcmask 662528
  %v222 = vsel %vm220, %v175, 0
  %v224 = vsel 0, 4294967295, 65535
  %v225 = vsel %vm66, %v224, 0
  %v227 = vand.u32 %v214, %v225
  %229 = vmatprep.subr.bf16.mxu0 0
  %230 = vmatpush1.bf16.msra.mxu0 0
  %231 = vmatprep.subr.bf16.mxu0 0
  %232 = vmatpush1.bf16.msra.mxu0 0
  %233 = vmatprep.subr.bf16.mxu0 0
  %234 = vmatpush1.bf16.msra.mxu0 %v227
  %235 = vmatprep.subr.bf16.mxu0 0
  %236 = vmatpush1.bf16.msra.mxu0 %v213
  %237 = vmatprep.subr.bf16.mxu0 0
  %238 = vmatpush1.bf16.msra.mxu0 %v212
  %239 = vmatprep.subr.bf16.mxu0 0
  %240 = vmatpush1.bf16.msra.mxu0 %v211
  %241 = vmatprep.subr.bf16.mxu0 0
  %242 = vmatpush1.bf16.msra.mxu0 %v210
  %243 = vmatprep.subr.bf16.mxu0 0
  %244 = vmatpush1.bf16.msra.mxu0 %v209
  %245 = vmatprep.subr.bf16.mxu0 0
  %246 = vmatpush2.bf16.msra.mxu0 0
  %247 = vmatprep.subr.bf16.mxu0 0
  %248 = vmatpush2.bf16.msra.mxu0 0
  %249 = vmatprep.subr.bf16.mxu0 0
  %250 = vmatpush2.bf16.msra.mxu0 0
  %251 = vmatprep.subr.bf16.mxu0 0
  %252 = vmatpush2.bf16.msra.mxu0 0
  %253 = vmatprep.subr.bf16.mxu0 0
  %254 = vmatpush2.bf16.msra.mxu0 0
  %255 = vmatprep.subr.bf16.mxu0 0
  %256 = vmatpush2.bf16.msra.mxu0 0
  %257 = vmatprep.subr.bf16.mxu0 0
  %258 = vmatpush2.bf16.msra.mxu0 0
  %259 = vmatprep.subr.bf16.mxu0 0
  %260 = vmatpush2.bf16.msra.mxu0 0
  %261 = vmatprep.mubr.bf16.mxu0 0
  %262 = vmatmul.mubr.bf16.gmra.mxu0 %v222
  %v263 = vpop.f32.mrf.mxu0
  %v264 = vadd.f32 0.0, %v263
  %v265 = vpop.f32.mrf.mxu0
  %v266 = vpop.f32.mrf.mxu0
  %v267 = vpop.f32.mrf.mxu0
  %268 = vdwg.mxu0
  %vm269 = vcmp.gt.f32.partialorder %v264, 0.0
  %v270 = vmin.f32 %v264, 0.0
  %v271 = vmul.f32 %v270, 1.442695
  %v272 = vpow.pop %v271
  %v273 = vsub.f32 %v272, 1.0
  %v274 = vsel %vm269, %v264, %v273
  %v275 = vpack.c.bf16 %v274, %v274
  %v276 = vld [vmem:[%s3] sm:$0xf]
  %v277 = vld [vmem:[%s3 + $0x4] sm:$0xf]
  %v278 = vld [vmem:[%s3 + $0x8] sm:$0xf]
  %v279 = vld [vmem:[%s3 + $0xc] sm:$0xf]
  %v280 = vld [vmem:[%s3 + $0x10] sm:$0xf]
  %v281 = vld [vmem:[%s3 + $0x14] sm:$0xf]
  %v282 = vld [vmem:[%s3 + $0x18] sm:$0xf]
  %v283 = vld [vmem:[%s3 + $0x1c] sm:$0xf]
  %v284 = vpack.c.bf16 %v142, %v142
  %s285 = scalar_lea.vmem %s2, 44
  %v286 = vld [vmem:[%s285] sm:$0xf]
  %v287 = vld [vmem:[%s285 + $0x4] sm:$0xf]
  %v288 = vld [vmem:[%s285 + $0x8] sm:$0xf]
  %v289 = vld [vmem:[%s285 + $0xc] sm:$0xf]
  %v290 = vld [vmem:[%s285 + $0x10] sm:$0xf]
  %v291 = vld [vmem:[%s285 + $0x14] sm:$0xf]
  %v292 = vld [vmem:[%s285 + $0x18] sm:$0xf]
  %v293 = vld [vmem:[%s285 + $0x1c] sm:$0xf]
  %v294 = vld [vmem:[%s285 + $0x20] sm:$0xf]
  %v295 = vld [vmem:[%s285 + $0x24] sm:$0xf]
  %v296 = vld [vmem:[%s285 + $0x28] sm:$0x1]
  %v308 = vunpack.c.l.b16 %v286
  %v309 = vunpack.c.l.b16 %v287
  %v310 = vunpack.c.l.b16 %v288
  %v311 = vunpack.c.l.b16 %v289
  %v312 = vunpack.c.l.b16 %v290
  %v313 = vunpack.c.l.b16 %v291
  %v314 = vunpack.c.l.b16 %v292
  %v315 = vunpack.c.l.b16 %v293
  %v316 = vunpack.c.l.b16 %v294
  %v317 = vunpack.c.l.b16 %v295
  %v318 = vunpack.c.l.b16 %v296
  %v319 = vpack.c.b16 %v309, %v308
  %v320 = vpack.c.b16 %v311, %v310
  %v321 = vpack.c.b16 %v313, %v312
  %v322 = vpack.c.b16 %v315, %v314
  %v323 = vpack.c.b16 %v317, %v316
  %v324 = vpack.c.b16 %v318, %v318
  %v331 = vsel %vm220, %v284, 0
  %v334 = vand.u32 %v324, %v225
  %336 = vmatprep.subr.bf16.mxu0 0
  %337 = vmatpush1.bf16.msra.mxu0 0
  %338 = vmatprep.subr.bf16.mxu0 0
  %339 = vmatpush1.bf16.msra.mxu0 0
  %340 = vmatprep.subr.bf16.mxu0 0
  %341 = vmatpush1.bf16.msra.mxu0 %v334
  %342 = vmatprep.subr.bf16.mxu0 0
  %343 = vmatpush1.bf16.msra.mxu0 %v323
  %344 = vmatprep.subr.bf16.mxu0 0
  %345 = vmatpush1.bf16.msra.mxu0 %v322
  %346 = vmatprep.subr.bf16.mxu0 0
  %347 = vmatpush1.bf16.msra.mxu0 %v321
  %348 = vmatprep.subr.bf16.mxu0 0
  %349 = vmatpush1.bf16.msra.mxu0 %v320
  %350 = vmatprep.subr.bf16.mxu0 0
  %351 = vmatpush1.bf16.msra.mxu0 %v319
  %352 = vmatprep.subr.bf16.mxu0 0
  %353 = vmatpush2.bf16.msra.mxu0 0
  %354 = vmatprep.subr.bf16.mxu0 0
  %355 = vmatpush2.bf16.msra.mxu0 0
  %356 = vmatprep.subr.bf16.mxu0 0
  %357 = vmatpush2.bf16.msra.mxu0 0
  %358 = vmatprep.subr.bf16.mxu0 0
  %359 = vmatpush2.bf16.msra.mxu0 0
  %360 = vmatprep.subr.bf16.mxu0 0
  %361 = vmatpush2.bf16.msra.mxu0 0
  %362 = vmatprep.subr.bf16.mxu0 0
  %363 = vmatpush2.bf16.msra.mxu0 0
  %364 = vmatprep.subr.bf16.mxu0 0
  %365 = vmatpush2.bf16.msra.mxu0 0
  %366 = vmatprep.subr.bf16.mxu0 0
  %367 = vmatpush2.bf16.msra.mxu0 0
  %368 = vmatprep.mubr.bf16.mxu0 0
  %369 = vmatmul.mubr.bf16.gmra.mxu0 %v331
  %v370 = vpop.f32.mrf.mxu0
  %v371 = vadd.f32 0.0, %v370
  %v372 = vpop.f32.mrf.mxu0
  %v373 = vpop.f32.mrf.mxu0
  %v374 = vpop.f32.mrf.mxu0
  %375 = vdwg.mxu0
  %vm376 = vcmp.gt.f32.partialorder %v371, 0.0
  %v377 = vmin.f32 %v371, 0.0
  %v378 = vmul.f32 %v377, 1.442695
  %v379 = vpow.pop %v378
  %v380 = vsub.f32 %v379, 1.0
  %v381 = vsel %vm376, %v371, %v380
  %v382 = vpack.c.bf16 %v381, %v381
  %s383 = scalar_lea.vmem %s3, 32
  %v384 = vld [vmem:[%s383] sm:$0xf]
  %v385 = vld [vmem:[%s383 + $0x4] sm:$0xf]
  %v386 = vld [vmem:[%s383 + $0x8] sm:$0xf]
  %v387 = vld [vmem:[%s383 + $0xc] sm:$0xf]
  %v388 = vld [vmem:[%s383 + $0x10] sm:$0xf]
  %v389 = vld [vmem:[%s383 + $0x14] sm:$0xf]
  %v390 = vld [vmem:[%s383 + $0x18] sm:$0xf]
  %v391 = vld [vmem:[%s383 + $0x1c] sm:$0xf]
  %v400 = vunpack.c.l.b16 %v384
  %v401 = vunpack.c.l.b16 %v385
  %v402 = vunpack.c.l.b16 %v386
  %v403 = vunpack.c.l.b16 %v387
  %v404 = vunpack.c.l.b16 %v388
  %v405 = vunpack.c.l.b16 %v389
  %v406 = vunpack.c.l.b16 %v390
  %v407 = vunpack.c.l.b16 %v391
  %v408 = vpack.c.b16 %v401, %v400
  %v409 = vpack.c.b16 %v403, %v402
  %v410 = vpack.c.b16 %v405, %v404
  %v411 = vpack.c.b16 %v407, %v406
  %vm416 = vcmask 523264
  %v418 = vsel %vm416, %v382, 0
  %420 = vmatprep.subr.bf16.mxu0 0
  %421 = vmatpush1.bf16.msra.mxu0 0
  %422 = vmatprep.subr.bf16.mxu0 0
  %423 = vmatpush1.bf16.msra.mxu0 0
  %424 = vmatprep.subr.bf16.mxu0 0
  %425 = vmatpush1.bf16.msra.mxu0 0
  %426 = vmatprep.subr.bf16.mxu0 0
  %427 = vmatpush1.bf16.msra.mxu0 0
  %428 = vmatprep.subr.bf16.mxu0 0
  %429 = vmatpush1.bf16.msra.mxu0 %v411
  %430 = vmatprep.subr.bf16.mxu0 0
  %431 = vmatpush1.bf16.msra.mxu0 %v410
  %432 = vmatprep.subr.bf16.mxu0 0
  %433 = vmatpush1.bf16.msra.mxu0 %v409
  %434 = vmatprep.subr.bf16.mxu0 0
  %435 = vmatpush1.bf16.msra.mxu0 %v408
  %436 = vmatprep.subr.bf16.mxu0 0
  %437 = vmatpush2.bf16.msra.mxu0 0
  %438 = vmatprep.subr.bf16.mxu0 0
  %439 = vmatpush2.bf16.msra.mxu0 0
  %440 = vmatprep.subr.bf16.mxu0 0
  %441 = vmatpush2.bf16.msra.mxu0 0
  %442 = vmatprep.subr.bf16.mxu0 0
  %443 = vmatpush2.bf16.msra.mxu0 0
  %444 = vmatprep.subr.bf16.mxu0 0
  %445 = vmatpush2.bf16.msra.mxu0 0
  %446 = vmatprep.subr.bf16.mxu0 0
  %447 = vmatpush2.bf16.msra.mxu0 0
  %448 = vmatprep.subr.bf16.mxu0 0
  %449 = vmatpush2.bf16.msra.mxu0 0
  %450 = vmatprep.subr.bf16.mxu0 0
  %451 = vmatpush2.bf16.msra.mxu0 0
  %452 = vmatprep.mubr.bf16.mxu0 0
  %453 = vmatmul.mubr.bf16.gmra.mxu0 %v418
  %v454 = vpop.f32.mrf.mxu0
  %v455 = vadd.f32 0.0, %v454
  %v456 = vpop.f32.mrf.mxu0
  %v457 = vpop.f32.mrf.mxu0
  %v458 = vpop.f32.mrf.mxu0
  %459 = vdwg.mxu0
  %v468 = vunpack.c.l.b16 %v276
  %v469 = vunpack.c.l.b16 %v277
  %v470 = vunpack.c.l.b16 %v278
  %v471 = vunpack.c.l.b16 %v279
  %v472 = vunpack.c.l.b16 %v280
  %v473 = vunpack.c.l.b16 %v281
  %v474 = vunpack.c.l.b16 %v282
  %v475 = vunpack.c.l.b16 %v283
  %v476 = vpack.c.b16 %v469, %v468
  %v477 = vpack.c.b16 %v471, %v470
  %v478 = vpack.c.b16 %v473, %v472
  %v479 = vpack.c.b16 %v475, %v474
  %v485 = vsel %vm416, %v275, 0
  %487 = vmatprep.subr.bf16.mxu0 0
  %488 = vmatpush1.bf16.msra.mxu0 0
  %489 = vmatprep.subr.bf16.mxu0 0
  %490 = vmatpush1.bf16.msra.mxu0 0
  %491 = vmatprep.subr.bf16.mxu0 0
  %492 = vmatpush1.bf16.msra.mxu0 0
  %493 = vmatprep.subr.bf16.mxu0 0
  %494 = vmatpush1.bf16.msra.mxu0 0
  %495 = vmatprep.subr.bf16.mxu0 0
  %496 = vmatpush1.bf16.msra.mxu0 %v479
  %497 = vmatprep.subr.bf16.mxu0 0
  %498 = vmatpush1.bf16.msra.mxu0 %v478
  %499 = vmatprep.subr.bf16.mxu0 0
  %500 = vmatpush1.bf16.msra.mxu0 %v477
  %501 = vmatprep.subr.bf16.mxu0 0
  %502 = vmatpush1.bf16.msra.mxu0 %v476
  %503 = vmatprep.subr.bf16.mxu0 0
  %504 = vmatpush2.bf16.msra.mxu0 0
  %505 = vmatprep.subr.bf16.mxu0 0
  %506 = vmatpush2.bf16.msra.mxu0 0
  %507 = vmatprep.subr.bf16.mxu0 0
  %508 = vmatpush2.bf16.msra.mxu0 0
  %509 = vmatprep.subr.bf16.mxu0 0
  %510 = vmatpush2.bf16.msra.mxu0 0
  %511 = vmatprep.subr.bf16.mxu0 0
  %512 = vmatpush2.bf16.msra.mxu0 0
  %513 = vmatprep.subr.bf16.mxu0 0
  %514 = vmatpush2.bf16.msra.mxu0 0
  %515 = vmatprep.subr.bf16.mxu0 0
  %516 = vmatpush2.bf16.msra.mxu0 0
  %517 = vmatprep.subr.bf16.mxu0 0
  %518 = vmatpush2.bf16.msra.mxu0 0
  %519 = vmatprep.mubr.bf16.mxu0 0
  %520 = vmatmul.mubr.bf16.gmra.mxu0 %v485
  %v521 = vpop.f32.mrf.mxu0
  %v522 = vadd.f32 %v455, %v521
  %v523 = vpop.f32.mrf.mxu0
  %v524 = vpop.f32.mrf.mxu0
  %v525 = vpop.f32.mrf.mxu0
  %526 = vdwg.mxu0
  %v527 = vpack.c.bf16 %v147, %v147
  %s528 = scalar_lea.vmem %s2, 88
  %v529 = vld [vmem:[%s528] sm:$0xf]
  %v530 = vld [vmem:[%s528 + $0x4] sm:$0xf]
  %v531 = vld [vmem:[%s528 + $0x8] sm:$0xf]
  %v532 = vld [vmem:[%s528 + $0xc] sm:$0xf]
  %v533 = vld [vmem:[%s528 + $0x10] sm:$0xf]
  %v534 = vld [vmem:[%s528 + $0x14] sm:$0xf]
  %v535 = vld [vmem:[%s528 + $0x18] sm:$0xf]
  %v536 = vld [vmem:[%s528 + $0x1c] sm:$0xf]
  %v537 = vld [vmem:[%s528 + $0x20] sm:$0xf]
  %v538 = vld [vmem:[%s528 + $0x24] sm:$0xf]
  %v539 = vld [vmem:[%s528 + $0x28] sm:$0x1]
  %v551 = vunpack.c.l.b16 %v529
  %v552 = vunpack.c.l.b16 %v530
  %v553 = vunpack.c.l.b16 %v531
  %v554 = vunpack.c.l.b16 %v532
  %v555 = vunpack.c.l.b16 %v533
  %v556 = vunpack.c.l.b16 %v534
  %v557 = vunpack.c.l.b16 %v535
  %v558 = vunpack.c.l.b16 %v536
  %v559 = vunpack.c.l.b16 %v537
  %v560 = vunpack.c.l.b16 %v538
  %v561 = vunpack.c.l.b16 %v539
  %v562 = vpack.c.b16 %v552, %v551
  %v563 = vpack.c.b16 %v554, %v553
  %v564 = vpack.c.b16 %v556, %v555
  %v565 = vpack.c.b16 %v558, %v557
  %v566 = vpack.c.b16 %v560, %v559
  %v567 = vpack.c.b16 %v561, %v561
  %v574 = vsel %vm220, %v527, 0
  %v577 = vand.u32 %v567, %v225
  %579 = vmatprep.subr.bf16.mxu0 0
  %580 = vmatpush1.bf16.msra.mxu0 0
  %581 = vmatprep.subr.bf16.mxu0 0
  %582 = vmatpush1.bf16.msra.mxu0 0
  %583 = vmatprep.subr.bf16.mxu0 0
  %584 = vmatpush1.bf16.msra.mxu0 %v577
  %585 = vmatprep.subr.bf16.mxu0 0
  %586 = vmatpush1.bf16.msra.mxu0 %v566
  %587 = vmatprep.subr.bf16.mxu0 0
  %588 = vmatpush1.bf16.msra.mxu0 %v565
  %589 = vmatprep.subr.bf16.mxu0 0
  %590 = vmatpush1.bf16.msra.mxu0 %v564
  %591 = vmatprep.subr.bf16.mxu0 0
  %592 = vmatpush1.bf16.msra.mxu0 %v563
  %593 = vmatprep.subr.bf16.mxu0 0
  %594 = vmatpush1.bf16.msra.mxu0 %v562
  %595 = vmatprep.subr.bf16.mxu0 0
  %596 = vmatpush2.bf16.msra.mxu0 0
  %597 = vmatprep.subr.bf16.mxu0 0
  %598 = vmatpush2.bf16.msra.mxu0 0
  %599 = vmatprep.subr.bf16.mxu0 0
  %600 = vmatpush2.bf16.msra.mxu0 0
  %601 = vmatprep.subr.bf16.mxu0 0
  %602 = vmatpush2.bf16.msra.mxu0 0
  %603 = vmatprep.subr.bf16.mxu0 0
  %604 = vmatpush2.bf16.msra.mxu0 0
  %605 = vmatprep.subr.bf16.mxu0 0
  %606 = vmatpush2.bf16.msra.mxu0 0
  %607 = vmatprep.subr.bf16.mxu0 0
  %608 = vmatpush2.bf16.msra.mxu0 0
  %609 = vmatprep.subr.bf16.mxu0 0
  %610 = vmatpush2.bf16.msra.mxu0 0
  %611 = vmatprep.mubr.bf16.mxu0 0
  %612 = vmatmul.mubr.bf16.gmra.mxu0 %v574
  %v613 = vpop.f32.mrf.mxu0
  %v614 = vadd.f32 0.0, %v613
  %v615 = vpop.f32.mrf.mxu0
  %v616 = vpop.f32.mrf.mxu0
  %v617 = vpop.f32.mrf.mxu0
  %618 = vdwg.mxu0
  %vm619 = vcmp.gt.f32.partialorder %v614, 0.0
  %v620 = vmin.f32 %v614, 0.0
  %v621 = vmul.f32 %v620, 1.442695
  %v622 = vpow.pop %v621
  %v623 = vsub.f32 %v622, 1.0
  %v624 = vsel %vm619, %v614, %v623
  %v625 = vpack.c.bf16 %v624, %v624
  %s626 = scalar_lea.vmem %s3, 64
  %v627 = vld [vmem:[%s626] sm:$0xf]
  %v628 = vld [vmem:[%s626 + $0x4] sm:$0xf]
  %v629 = vld [vmem:[%s626 + $0x8] sm:$0xf]
  %v630 = vld [vmem:[%s626 + $0xc] sm:$0xf]
  %v631 = vld [vmem:[%s626 + $0x10] sm:$0xf]
  %v632 = vld [vmem:[%s626 + $0x14] sm:$0xf]
  %v633 = vld [vmem:[%s626 + $0x18] sm:$0xf]
  %v634 = vld [vmem:[%s626 + $0x1c] sm:$0xf]
  %v643 = vunpack.c.l.b16 %v627
  %v644 = vunpack.c.l.b16 %v628
  %v645 = vunpack.c.l.b16 %v629
  %v646 = vunpack.c.l.b16 %v630
  %v647 = vunpack.c.l.b16 %v631
  %v648 = vunpack.c.l.b16 %v632
  %v649 = vunpack.c.l.b16 %v633
  %v650 = vunpack.c.l.b16 %v634
  %v651 = vpack.c.b16 %v644, %v643
  %v652 = vpack.c.b16 %v646, %v645
  %v653 = vpack.c.b16 %v648, %v647
  %v654 = vpack.c.b16 %v650, %v649
  %v660 = vsel %vm416, %v625, 0
  %662 = vmatprep.subr.bf16.mxu0 0
  %663 = vmatpush1.bf16.msra.mxu0 0
  %664 = vmatprep.subr.bf16.mxu0 0
  %665 = vmatpush1.bf16.msra.mxu0 0
  %666 = vmatprep.subr.bf16.mxu0 0
  %667 = vmatpush1.bf16.msra.mxu0 0
  %668 = vmatprep.subr.bf16.mxu0 0
  %669 = vmatpush1.bf16.msra.mxu0 0
  %670 = vmatprep.subr.bf16.mxu0 0
  %671 = vmatpush1.bf16.msra.mxu0 %v654
  %672 = vmatprep.subr.bf16.mxu0 0
  %673 = vmatpush1.bf16.msra.mxu0 %v653
  %674 = vmatprep.subr.bf16.mxu0 0
  %675 = vmatpush1.bf16.msra.mxu0 %v652
  %676 = vmatprep.subr.bf16.mxu0 0
  %677 = vmatpush1.bf16.msra.mxu0 %v651
  %678 = vmatprep.subr.bf16.mxu0 0
  %679 = vmatpush2.bf16.msra.mxu0 0
  %680 = vmatprep.subr.bf16.mxu0 0
  %681 = vmatpush2.bf16.msra.mxu0 0
  %682 = vmatprep.subr.bf16.mxu0 0
  %683 = vmatpush2.bf16.msra.mxu0 0
  %684 = vmatprep.subr.bf16.mxu0 0
  %685 = vmatpush2.bf16.msra.mxu0 0
  %686 = vmatprep.subr.bf16.mxu0 0
  %687 = vmatpush2.bf16.msra.mxu0 0
  %688 = vmatprep.subr.bf16.mxu0 0
  %689 = vmatpush2.bf16.msra.mxu0 0
  %690 = vmatprep.subr.bf16.mxu0 0
  %691 = vmatpush2.bf16.msra.mxu0 0
  %692 = vmatprep.subr.bf16.mxu0 0
  %693 = vmatpush2.bf16.msra.mxu0 0
  %694 = vmatprep.mubr.bf16.mxu0 0
  %695 = vmatmul.mubr.bf16.gmra.mxu0 %v660
  %v696 = vpop.f32.mrf.mxu0
  %v697 = vadd.f32 0.0, %v696
  %v698 = vpop.f32.mrf.mxu0
  %v699 = vpop.f32.mrf.mxu0
  %v700 = vpop.f32.mrf.mxu0
  %701 = vdwg.mxu0
  %v702 = vadd.f32 %v522, %v697
  %v703 = vpack.c.bf16 %v152, %v152
  %s704 = scalar_lea.vmem %s2, 132
  %v705 = vld [vmem:[%s704] sm:$0xf]
  %v706 = vld [vmem:[%s704 + $0x4] sm:$0xf]
  %v707 = vld [vmem:[%s704 + $0x8] sm:$0xf]
  %v708 = vld [vmem:[%s704 + $0xc] sm:$0xf]
  %v709 = vld [vmem:[%s704 + $0x10] sm:$0xf]
  %v710 = vld [vmem:[%s704 + $0x14] sm:$0xf]
  %v711 = vld [vmem:[%s704 + $0x18] sm:$0xf]
  %v712 = vld [vmem:[%s704 + $0x1c] sm:$0xf]
  %v713 = vld [vmem:[%s704 + $0x20] sm:$0xf]
  %v714 = vld [vmem:[%s704 + $0x24] sm:$0xf]
  %v715 = vld [vmem:[%s704 + $0x28] sm:$0x1]
  %v727 = vunpack.c.l.b16 %v705
  %v728 = vunpack.c.l.b16 %v706
  %v729 = vunpack.c.l.b16 %v707
  %v730 = vunpack.c.l.b16 %v708
  %v731 = vunpack.c.l.b16 %v709
  %v732 = vunpack.c.l.b16 %v710
  %v733 = vunpack.c.l.b16 %v711
  %v734 = vunpack.c.l.b16 %v712
  %v735 = vunpack.c.l.b16 %v713
  %v736 = vunpack.c.l.b16 %v714
  %v737 = vunpack.c.l.b16 %v715
  %v738 = vpack.c.b16 %v728, %v727
  %v739 = vpack.c.b16 %v730, %v729
  %v740 = vpack.c.b16 %v732, %v731
  %v741 = vpack.c.b16 %v734, %v733
  %v742 = vpack.c.b16 %v736, %v735
  %v743 = vpack.c.b16 %v737, %v737
  %v750 = vsel %vm220, %v703, 0
  %v753 = vand.u32 %v743, %v225
  %755 = vmatprep.subr.bf16.mxu0 0
  %756 = vmatpush1.bf16.msra.mxu0 0
  %757 = vmatprep.subr.bf16.mxu0 0
  %758 = vmatpush1.bf16.msra.mxu0 0
  %759 = vmatprep.subr.bf16.mxu0 0
  %760 = vmatpush1.bf16.msra.mxu0 %v753
  %761 = vmatprep.subr.bf16.mxu0 0
  %762 = vmatpush1.bf16.msra.mxu0 %v742
  %763 = vmatprep.subr.bf16.mxu0 0
  %764 = vmatpush1.bf16.msra.mxu0 %v741
  %765 = vmatprep.subr.bf16.mxu0 0
  %766 = vmatpush1.bf16.msra.mxu0 %v740
  %767 = vmatprep.subr.bf16.mxu0 0
  %768 = vmatpush1.bf16.msra.mxu0 %v739
  %769 = vmatprep.subr.bf16.mxu0 0
  %770 = vmatpush1.bf16.msra.mxu0 %v738
  %771 = vmatprep.subr.bf16.mxu0 0
  %772 = vmatpush2.bf16.msra.mxu0 0
  %773 = vmatprep.subr.bf16.mxu0 0
  %774 = vmatpush2.bf16.msra.mxu0 0
  %775 = vmatprep.subr.bf16.mxu0 0
  %776 = vmatpush2.bf16.msra.mxu0 0
  %777 = vmatprep.subr.bf16.mxu0 0
  %778 = vmatpush2.bf16.msra.mxu0 0
  %779 = vmatprep.subr.bf16.mxu0 0
  %780 = vmatpush2.bf16.msra.mxu0 0
  %781 = vmatprep.subr.bf16.mxu0 0
  %782 = vmatpush2.bf16.msra.mxu0 0
  %783 = vmatprep.subr.bf16.mxu0 0
  %784 = vmatpush2.bf16.msra.mxu0 0
  %785 = vmatprep.subr.bf16.mxu0 0
  %786 = vmatpush2.bf16.msra.mxu0 0
  %787 = vmatprep.mubr.bf16.mxu0 0
  %788 = vmatmul.mubr.bf16.gmra.mxu0 %v750
  %v789 = vpop.f32.mrf.mxu0
  %v790 = vadd.f32 0.0, %v789
  %v791 = vpop.f32.mrf.mxu0
  %v792 = vpop.f32.mrf.mxu0
  %v793 = vpop.f32.mrf.mxu0
  %794 = vdwg.mxu0
  %vm795 = vcmp.gt.f32.partialorder %v790, 0.0
  %v796 = vmin.f32 %v790, 0.0
  %v797 = vmul.f32 %v796, 1.442695
  %v798 = vpow.pop %v797
  %v799 = vsub.f32 %v798, 1.0
  %v800 = vsel %vm795, %v790, %v799
  %v801 = vpack.c.bf16 %v800, %v800
  %s802 = scalar_lea.vmem %s3, 96
  %v803 = vld [vmem:[%s802] sm:$0xf]
  %v804 = vld [vmem:[%s802 + $0x4] sm:$0xf]
  %v805 = vld [vmem:[%s802 + $0x8] sm:$0xf]
  %v806 = vld [vmem:[%s802 + $0xc] sm:$0xf]
  %v807 = vld [vmem:[%s802 + $0x10] sm:$0xf]
  %v808 = vld [vmem:[%s802 + $0x14] sm:$0xf]
  %v809 = vld [vmem:[%s802 + $0x18] sm:$0xf]
  %v810 = vld [vmem:[%s802 + $0x1c] sm:$0xf]
  %v819 = vunpack.c.l.b16 %v803
  %v820 = vunpack.c.l.b16 %v804
  %v821 = vunpack.c.l.b16 %v805
  %v822 = vunpack.c.l.b16 %v806
  %v823 = vunpack.c.l.b16 %v807
  %v824 = vunpack.c.l.b16 %v808
  %v825 = vunpack.c.l.b16 %v809
  %v826 = vunpack.c.l.b16 %v810
  %v827 = vpack.c.b16 %v820, %v819
  %v828 = vpack.c.b16 %v822, %v821
  %v829 = vpack.c.b16 %v824, %v823
  %v830 = vpack.c.b16 %v826, %v825
  %v836 = vsel %vm416, %v801, 0
  %838 = vmatprep.subr.bf16.mxu0 0
  %839 = vmatpush1.bf16.msra.mxu0 0
  %840 = vmatprep.subr.bf16.mxu0 0
  %841 = vmatpush1.bf16.msra.mxu0 0
  %842 = vmatprep.subr.bf16.mxu0 0
  %843 = vmatpush1.bf16.msra.mxu0 0
  %844 = vmatprep.subr.bf16.mxu0 0
  %845 = vmatpush1.bf16.msra.mxu0 0
  %846 = vmatprep.subr.bf16.mxu0 0
  %847 = vmatpush1.bf16.msra.mxu0 %v830
  %848 = vmatprep.subr.bf16.mxu0 0
  %849 = vmatpush1.bf16.msra.mxu0 %v829
  %850 = vmatprep.subr.bf16.mxu0 0
  %851 = vmatpush1.bf16.msra.mxu0 %v828
  %852 = vmatprep.subr.bf16.mxu0 0
  %853 = vmatpush1.bf16.msra.mxu0 %v827
  %854 = vmatprep.subr.bf16.mxu0 0
  %855 = vmatpush2.bf16.msra.mxu0 0
  %856 = vmatprep.subr.bf16.mxu0 0
  %857 = vmatpush2.bf16.msra.mxu0 0
  %858 = vmatprep.subr.bf16.mxu0 0
  %859 = vmatpush2.bf16.msra.mxu0 0
  %860 = vmatprep.subr.bf16.mxu0 0
  %861 = vmatpush2.bf16.msra.mxu0 0
  %862 = vmatprep.subr.bf16.mxu0 0
  %863 = vmatpush2.bf16.msra.mxu0 0
  %864 = vmatprep.subr.bf16.mxu0 0
  %865 = vmatpush2.bf16.msra.mxu0 0
  %866 = vmatprep.subr.bf16.mxu0 0
  %867 = vmatpush2.bf16.msra.mxu0 0
  %868 = vmatprep.subr.bf16.mxu0 0
  %869 = vmatpush2.bf16.msra.mxu0 0
  %870 = vmatprep.mubr.bf16.mxu0 0
  %871 = vmatmul.mubr.bf16.gmra.mxu0 %v836
  %v872 = vpop.f32.mrf.mxu0
  %v873 = vadd.f32 0.0, %v872
  %v874 = vpop.f32.mrf.mxu0
  %v875 = vpop.f32.mrf.mxu0
  %v876 = vpop.f32.mrf.mxu0
  %877 = vdwg.mxu0
  %v878 = vadd.f32 %v702, %v873
  %v879 = vpack.c.bf16 %v157, %v157
  %s880 = scalar_lea.vmem %s2, 176
  %v881 = vld [vmem:[%s880] sm:$0xf]
  %v882 = vld [vmem:[%s880 + $0x4] sm:$0xf]
  %v883 = vld [vmem:[%s880 + $0x8] sm:$0xf]
  %v884 = vld [vmem:[%s880 + $0xc] sm:$0xf]
  %v885 = vld [vmem:[%s880 + $0x10] sm:$0xf]
  %v886 = vld [vmem:[%s880 + $0x14] sm:$0xf]
  %v887 = vld [vmem:[%s880 + $0x18] sm:$0xf]
  %v888 = vld [vmem:[%s880 + $0x1c] sm:$0xf]
  %v889 = vld [vmem:[%s880 + $0x20] sm:$0xf]
  %v890 = vld [vmem:[%s880 + $0x24] sm:$0xf]
  %v891 = vld [vmem:[%s880 + $0x28] sm:$0x1]
  %v903 = vunpack.c.l.b16 %v881
  %v904 = vunpack.c.l.b16 %v882
  %v905 = vunpack.c.l.b16 %v883
  %v906 = vunpack.c.l.b16 %v884
  %v907 = vunpack.c.l.b16 %v885
  %v908 = vunpack.c.l.b16 %v886
  %v909 = vunpack.c.l.b16 %v887
  %v910 = vunpack.c.l.b16 %v888
  %v911 = vunpack.c.l.b16 %v889
  %v912 = vunpack.c.l.b16 %v890
  %v913 = vunpack.c.l.b16 %v891
  %v914 = vpack.c.b16 %v904, %v903
  %v915 = vpack.c.b16 %v906, %v905
  %v916 = vpack.c.b16 %v908, %v907
  %v917 = vpack.c.b16 %v910, %v909
  %v918 = vpack.c.b16 %v912, %v911
  %v919 = vpack.c.b16 %v913, %v913
  %v926 = vsel %vm220, %v879, 0
  %v929 = vand.u32 %v919, %v225
  %931 = vmatprep.subr.bf16.mxu0 0
  %932 = vmatpush1.bf16.msra.mxu0 0
  %933 = vmatprep.subr.bf16.mxu0 0
  %934 = vmatpush1.bf16.msra.mxu0 0
  %935 = vmatprep.subr.bf16.mxu0 0
  %936 = vmatpush1.bf16.msra.mxu0 %v929
  %937 = vmatprep.subr.bf16.mxu0 0
  %938 = vmatpush1.bf16.msra.mxu0 %v918
  %939 = vmatprep.subr.bf16.mxu0 0
  %940 = vmatpush1.bf16.msra.mxu0 %v917
  %941 = vmatprep.subr.bf16.mxu0 0
  %942 = vmatpush1.bf16.msra.mxu0 %v916
  %943 = vmatprep.subr.bf16.mxu0 0
  %944 = vmatpush1.bf16.msra.mxu0 %v915
  %945 = vmatprep.subr.bf16.mxu0 0
  %946 = vmatpush1.bf16.msra.mxu0 %v914
  %947 = vmatprep.subr.bf16.mxu0 0
  %948 = vmatpush2.bf16.msra.mxu0 0
  %949 = vmatprep.subr.bf16.mxu0 0
  %950 = vmatpush2.bf16.msra.mxu0 0
  %951 = vmatprep.subr.bf16.mxu0 0
  %952 = vmatpush2.bf16.msra.mxu0 0
  %953 = vmatprep.subr.bf16.mxu0 0
  %954 = vmatpush2.bf16.msra.mxu0 0
  %955 = vmatprep.subr.bf16.mxu0 0
  %956 = vmatpush2.bf16.msra.mxu0 0
  %957 = vmatprep.subr.bf16.mxu0 0
  %958 = vmatpush2.bf16.msra.mxu0 0
  %959 = vmatprep.subr.bf16.mxu0 0
  %960 = vmatpush2.bf16.msra.mxu0 0
  %961 = vmatprep.subr.bf16.mxu0 0
  %962 = vmatpush2.bf16.msra.mxu0 0
  %963 = vmatprep.mubr.bf16.mxu0 0
  %964 = vmatmul.mubr.bf16.gmra.mxu0 %v926
  %v965 = vpop.f32.mrf.mxu0
  %v966 = vadd.f32 0.0, %v965
  %v967 = vpop.f32.mrf.mxu0
  %v968 = vpop.f32.mrf.mxu0
  %v969 = vpop.f32.mrf.mxu0
  %970 = vdwg.mxu0
  %vm971 = vcmp.gt.f32.partialorder %v966, 0.0
  %v972 = vmin.f32 %v966, 0.0
  %v973 = vmul.f32 %v972, 1.442695
  %v974 = vpow.pop %v973
  %v975 = vsub.f32 %v974, 1.0
  %v976 = vsel %vm971, %v966, %v975
  %v977 = vpack.c.bf16 %v976, %v976
  %s978 = scalar_lea.vmem %s3, 128
  %v979 = vld [vmem:[%s978] sm:$0xf]
  %v980 = vld [vmem:[%s978 + $0x4] sm:$0xf]
  %v981 = vld [vmem:[%s978 + $0x8] sm:$0xf]
  %v982 = vld [vmem:[%s978 + $0xc] sm:$0xf]
  %v983 = vld [vmem:[%s978 + $0x10] sm:$0xf]
  %v984 = vld [vmem:[%s978 + $0x14] sm:$0xf]
  %v985 = vld [vmem:[%s978 + $0x18] sm:$0xf]
  %v986 = vld [vmem:[%s978 + $0x1c] sm:$0xf]
  %v995 = vunpack.c.l.b16 %v979
  %v996 = vunpack.c.l.b16 %v980
  %v997 = vunpack.c.l.b16 %v981
  %v998 = vunpack.c.l.b16 %v982
  %v999 = vunpack.c.l.b16 %v983
  %v1000 = vunpack.c.l.b16 %v984
  %v1001 = vunpack.c.l.b16 %v985
  %v1002 = vunpack.c.l.b16 %v986
  %v1003 = vpack.c.b16 %v996, %v995
  %v1004 = vpack.c.b16 %v998, %v997
  %v1005 = vpack.c.b16 %v1000, %v999
  %v1006 = vpack.c.b16 %v1002, %v1001
  %v1012 = vsel %vm416, %v977, 0
  %1014 = vmatprep.subr.bf16.mxu0 0
  %1015 = vmatpush1.bf16.msra.mxu0 0
  %1016 = vmatprep.subr.bf16.mxu0 0
  %1017 = vmatpush1.bf16.msra.mxu0 0
  %1018 = vmatprep.subr.bf16.mxu0 0
  %1019 = vmatpush1.bf16.msra.mxu0 0
  %1020 = vmatprep.subr.bf16.mxu0 0
  %1021 = vmatpush1.bf16.msra.mxu0 0
  %1022 = vmatprep.subr.bf16.mxu0 0
  %1023 = vmatpush1.bf16.msra.mxu0 %v1006
  %1024 = vmatprep.subr.bf16.mxu0 0
  %1025 = vmatpush1.bf16.msra.mxu0 %v1005
  %1026 = vmatprep.subr.bf16.mxu0 0
  %1027 = vmatpush1.bf16.msra.mxu0 %v1004
  %1028 = vmatprep.subr.bf16.mxu0 0
  %1029 = vmatpush1.bf16.msra.mxu0 %v1003
  %1030 = vmatprep.subr.bf16.mxu0 0
  %1031 = vmatpush2.bf16.msra.mxu0 0
  %1032 = vmatprep.subr.bf16.mxu0 0
  %1033 = vmatpush2.bf16.msra.mxu0 0
  %1034 = vmatprep.subr.bf16.mxu0 0
  %1035 = vmatpush2.bf16.msra.mxu0 0
  %1036 = vmatprep.subr.bf16.mxu0 0
  %1037 = vmatpush2.bf16.msra.mxu0 0
  %1038 = vmatprep.subr.bf16.mxu0 0
  %1039 = vmatpush2.bf16.msra.mxu0 0
  %1040 = vmatprep.subr.bf16.mxu0 0
  %1041 = vmatpush2.bf16.msra.mxu0 0
  %1042 = vmatprep.subr.bf16.mxu0 0
  %1043 = vmatpush2.bf16.msra.mxu0 0
  %1044 = vmatprep.subr.bf16.mxu0 0
  %1045 = vmatpush2.bf16.msra.mxu0 0
  %1046 = vmatprep.mubr.bf16.mxu0 0
  %1047 = vmatmul.mubr.bf16.gmra.mxu0 %v1012
  %v1048 = vpop.f32.mrf.mxu0
  %v1049 = vadd.f32 0.0, %v1048
  %v1050 = vpop.f32.mrf.mxu0
  %v1051 = vpop.f32.mrf.mxu0
  %v1052 = vpop.f32.mrf.mxu0
  %1053 = vdwg.mxu0
  %v1054 = vadd.f32 %v878, %v1049
  %v1055 = vpack.c.bf16 %v162, %v162
  %s1056 = scalar_lea.vmem %s2, 220
  %v1057 = vld [vmem:[%s1056] sm:$0xf]
  %v1058 = vld [vmem:[%s1056 + $0x4] sm:$0xf]
  %v1059 = vld [vmem:[%s1056 + $0x8] sm:$0xf]
  %v1060 = vld [vmem:[%s1056 + $0xc] sm:$0xf]
  %v1061 = vld [vmem:[%s1056 + $0x10] sm:$0xf]
  %v1062 = vld [vmem:[%s1056 + $0x14] sm:$0xf]
  %v1063 = vld [vmem:[%s1056 + $0x18] sm:$0xf]
  %v1064 = vld [vmem:[%s1056 + $0x1c] sm:$0xf]
  %v1065 = vld [vmem:[%s1056 + $0x20] sm:$0xf]
  %v1066 = vld [vmem:[%s1056 + $0x24] sm:$0xf]
  %v1067 = vld [vmem:[%s1056 + $0x28] sm:$0x1]
  %v1079 = vunpack.c.l.b16 %v1057
  %v1080 = vunpack.c.l.b16 %v1058
  %v1081 = vunpack.c.l.b16 %v1059
  %v1082 = vunpack.c.l.b16 %v1060
  %v1083 = vunpack.c.l.b16 %v1061
  %v1084 = vunpack.c.l.b16 %v1062
  %v1085 = vunpack.c.l.b16 %v1063
  %v1086 = vunpack.c.l.b16 %v1064
  %v1087 = vunpack.c.l.b16 %v1065
  %v1088 = vunpack.c.l.b16 %v1066
  %v1089 = vunpack.c.l.b16 %v1067
  %v1090 = vpack.c.b16 %v1080, %v1079
  %v1091 = vpack.c.b16 %v1082, %v1081
  %v1092 = vpack.c.b16 %v1084, %v1083
  %v1093 = vpack.c.b16 %v1086, %v1085
  %v1094 = vpack.c.b16 %v1088, %v1087
  %v1095 = vpack.c.b16 %v1089, %v1089
  %v1102 = vsel %vm220, %v1055, 0
  %v1105 = vand.u32 %v1095, %v225
  %1107 = vmatprep.subr.bf16.mxu0 0
  %1108 = vmatpush1.bf16.msra.mxu0 0
  %1109 = vmatprep.subr.bf16.mxu0 0
  %1110 = vmatpush1.bf16.msra.mxu0 0
  %1111 = vmatprep.subr.bf16.mxu0 0
  %1112 = vmatpush1.bf16.msra.mxu0 %v1105
  %1113 = vmatprep.subr.bf16.mxu0 0
  %1114 = vmatpush1.bf16.msra.mxu0 %v1094
  %1115 = vmatprep.subr.bf16.mxu0 0
  %1116 = vmatpush1.bf16.msra.mxu0 %v1093
  %1117 = vmatprep.subr.bf16.mxu0 0
  %1118 = vmatpush1.bf16.msra.mxu0 %v1092
  %1119 = vmatprep.subr.bf16.mxu0 0
  %1120 = vmatpush1.bf16.msra.mxu0 %v1091
  %1121 = vmatprep.subr.bf16.mxu0 0
  %1122 = vmatpush1.bf16.msra.mxu0 %v1090
  %1123 = vmatprep.subr.bf16.mxu0 0
  %1124 = vmatpush2.bf16.msra.mxu0 0
  %1125 = vmatprep.subr.bf16.mxu0 0
  %1126 = vmatpush2.bf16.msra.mxu0 0
  %1127 = vmatprep.subr.bf16.mxu0 0
  %1128 = vmatpush2.bf16.msra.mxu0 0
  %1129 = vmatprep.subr.bf16.mxu0 0
  %1130 = vmatpush2.bf16.msra.mxu0 0
  %1131 = vmatprep.subr.bf16.mxu0 0
  %1132 = vmatpush2.bf16.msra.mxu0 0
  %1133 = vmatprep.subr.bf16.mxu0 0
  %1134 = vmatpush2.bf16.msra.mxu0 0
  %1135 = vmatprep.subr.bf16.mxu0 0
  %1136 = vmatpush2.bf16.msra.mxu0 0
  %1137 = vmatprep.subr.bf16.mxu0 0
  %1138 = vmatpush2.bf16.msra.mxu0 0
  %1139 = vmatprep.mubr.bf16.mxu0 0
  %1140 = vmatmul.mubr.bf16.gmra.mxu0 %v1102
  %v1141 = vpop.f32.mrf.mxu0
  %v1142 = vadd.f32 0.0, %v1141
  %v1143 = vpop.f32.mrf.mxu0
  %v1144 = vpop.f32.mrf.mxu0
  %v1145 = vpop.f32.mrf.mxu0
  %1146 = vdwg.mxu0
  %vm1147 = vcmp.gt.f32.partialorder %v1142, 0.0
  %v1148 = vmin.f32 %v1142, 0.0
  %v1149 = vmul.f32 %v1148, 1.442695
  %v1150 = vpow.pop %v1149
  %v1151 = vsub.f32 %v1150, 1.0
  %v1152 = vsel %vm1147, %v1142, %v1151
  %v1153 = vpack.c.bf16 %v1152, %v1152
  %s1154 = scalar_lea.vmem %s3, 160
  %v1155 = vld [vmem:[%s1154] sm:$0xf]
  %v1156 = vld [vmem:[%s1154 + $0x4] sm:$0xf]
  %v1157 = vld [vmem:[%s1154 + $0x8] sm:$0xf]
  %v1158 = vld [vmem:[%s1154 + $0xc] sm:$0xf]
  %v1159 = vld [vmem:[%s1154 + $0x10] sm:$0xf]
  %v1160 = vld [vmem:[%s1154 + $0x14] sm:$0xf]
  %v1161 = vld [vmem:[%s1154 + $0x18] sm:$0xf]
  %v1162 = vld [vmem:[%s1154 + $0x1c] sm:$0xf]
  %v1171 = vunpack.c.l.b16 %v1155
  %v1172 = vunpack.c.l.b16 %v1156
  %v1173 = vunpack.c.l.b16 %v1157
  %v1174 = vunpack.c.l.b16 %v1158
  %v1175 = vunpack.c.l.b16 %v1159
  %v1176 = vunpack.c.l.b16 %v1160
  %v1177 = vunpack.c.l.b16 %v1161
  %v1178 = vunpack.c.l.b16 %v1162
  %v1179 = vpack.c.b16 %v1172, %v1171
  %v1180 = vpack.c.b16 %v1174, %v1173
  %v1181 = vpack.c.b16 %v1176, %v1175
  %v1182 = vpack.c.b16 %v1178, %v1177
  %v1188 = vsel %vm416, %v1153, 0
  %1190 = vmatprep.subr.bf16.mxu0 0
  %1191 = vmatpush1.bf16.msra.mxu0 0
  %1192 = vmatprep.subr.bf16.mxu0 0
  %1193 = vmatpush1.bf16.msra.mxu0 0
  %1194 = vmatprep.subr.bf16.mxu0 0
  %1195 = vmatpush1.bf16.msra.mxu0 0
  %1196 = vmatprep.subr.bf16.mxu0 0
  %1197 = vmatpush1.bf16.msra.mxu0 0
  %1198 = vmatprep.subr.bf16.mxu0 0
  %1199 = vmatpush1.bf16.msra.mxu0 %v1182
  %1200 = vmatprep.subr.bf16.mxu0 0
  %1201 = vmatpush1.bf16.msra.mxu0 %v1181
  %1202 = vmatprep.subr.bf16.mxu0 0
  %1203 = vmatpush1.bf16.msra.mxu0 %v1180
  %1204 = vmatprep.subr.bf16.mxu0 0
  %1205 = vmatpush1.bf16.msra.mxu0 %v1179
  %1206 = vmatprep.subr.bf16.mxu0 0
  %1207 = vmatpush2.bf16.msra.mxu0 0
  %1208 = vmatprep.subr.bf16.mxu0 0
  %1209 = vmatpush2.bf16.msra.mxu0 0
  %1210 = vmatprep.subr.bf16.mxu0 0
  %1211 = vmatpush2.bf16.msra.mxu0 0
  %1212 = vmatprep.subr.bf16.mxu0 0
  %1213 = vmatpush2.bf16.msra.mxu0 0
  %1214 = vmatprep.subr.bf16.mxu0 0
  %1215 = vmatpush2.bf16.msra.mxu0 0
  %1216 = vmatprep.subr.bf16.mxu0 0
  %1217 = vmatpush2.bf16.msra.mxu0 0
  %1218 = vmatprep.subr.bf16.mxu0 0
  %1219 = vmatpush2.bf16.msra.mxu0 0
  %1220 = vmatprep.subr.bf16.mxu0 0
  %1221 = vmatpush2.bf16.msra.mxu0 0
  %1222 = vmatprep.mubr.bf16.mxu0 0
  %1223 = vmatmul.mubr.bf16.gmra.mxu0 %v1188
  %v1224 = vpop.f32.mrf.mxu0
  %v1225 = vadd.f32 0.0, %v1224
  %v1226 = vpop.f32.mrf.mxu0
  %v1227 = vpop.f32.mrf.mxu0
  %v1228 = vpop.f32.mrf.mxu0
  %1229 = vdwg.mxu0
  %v1230 = vadd.f32 %v1054, %v1225
  %v1231 = vpack.c.bf16 %v167, %v167
  %s1232 = scalar_lea.vmem %s2, 264
  %v1233 = vld [vmem:[%s1232] sm:$0xf]
  %v1234 = vld [vmem:[%s1232 + $0x4] sm:$0xf]
  %v1235 = vld [vmem:[%s1232 + $0x8] sm:$0xf]
  %v1236 = vld [vmem:[%s1232 + $0xc] sm:$0xf]
  %v1237 = vld [vmem:[%s1232 + $0x10] sm:$0xf]
  %v1238 = vld [vmem:[%s1232 + $0x14] sm:$0xf]
  %v1239 = vld [vmem:[%s1232 + $0x18] sm:$0xf]
  %v1240 = vld [vmem:[%s1232 + $0x1c] sm:$0xf]
  %v1241 = vld [vmem:[%s1232 + $0x20] sm:$0xf]
  %v1242 = vld [vmem:[%s1232 + $0x24] sm:$0xf]
  %v1243 = vld [vmem:[%s1232 + $0x28] sm:$0x1]
  %v1255 = vunpack.c.l.b16 %v1233
  %v1256 = vunpack.c.l.b16 %v1234
  %v1257 = vunpack.c.l.b16 %v1235
  %v1258 = vunpack.c.l.b16 %v1236
  %v1259 = vunpack.c.l.b16 %v1237
  %v1260 = vunpack.c.l.b16 %v1238
  %v1261 = vunpack.c.l.b16 %v1239
  %v1262 = vunpack.c.l.b16 %v1240
  %v1263 = vunpack.c.l.b16 %v1241
  %v1264 = vunpack.c.l.b16 %v1242
  %v1265 = vunpack.c.l.b16 %v1243
  %v1266 = vpack.c.b16 %v1256, %v1255
  %v1267 = vpack.c.b16 %v1258, %v1257
  %v1268 = vpack.c.b16 %v1260, %v1259
  %v1269 = vpack.c.b16 %v1262, %v1261
  %v1270 = vpack.c.b16 %v1264, %v1263
  %v1271 = vpack.c.b16 %v1265, %v1265
  %v1278 = vsel %vm220, %v1231, 0
  %v1281 = vand.u32 %v1271, %v225
  %1283 = vmatprep.subr.bf16.mxu0 0
  %1284 = vmatpush1.bf16.msra.mxu0 0
  %1285 = vmatprep.subr.bf16.mxu0 0
  %1286 = vmatpush1.bf16.msra.mxu0 0
  %1287 = vmatprep.subr.bf16.mxu0 0
  %1288 = vmatpush1.bf16.msra.mxu0 %v1281
  %1289 = vmatprep.subr.bf16.mxu0 0
  %1290 = vmatpush1.bf16.msra.mxu0 %v1270
  %1291 = vmatprep.subr.bf16.mxu0 0
  %1292 = vmatpush1.bf16.msra.mxu0 %v1269
  %1293 = vmatprep.subr.bf16.mxu0 0
  %1294 = vmatpush1.bf16.msra.mxu0 %v1268
  %1295 = vmatprep.subr.bf16.mxu0 0
  %1296 = vmatpush1.bf16.msra.mxu0 %v1267
  %1297 = vmatprep.subr.bf16.mxu0 0
  %1298 = vmatpush1.bf16.msra.mxu0 %v1266
  %1299 = vmatprep.subr.bf16.mxu0 0
  %1300 = vmatpush2.bf16.msra.mxu0 0
  %1301 = vmatprep.subr.bf16.mxu0 0
  %1302 = vmatpush2.bf16.msra.mxu0 0
  %1303 = vmatprep.subr.bf16.mxu0 0
  %1304 = vmatpush2.bf16.msra.mxu0 0
  %1305 = vmatprep.subr.bf16.mxu0 0
  %1306 = vmatpush2.bf16.msra.mxu0 0
  %1307 = vmatprep.subr.bf16.mxu0 0
  %1308 = vmatpush2.bf16.msra.mxu0 0
  %1309 = vmatprep.subr.bf16.mxu0 0
  %1310 = vmatpush2.bf16.msra.mxu0 0
  %1311 = vmatprep.subr.bf16.mxu0 0
  %1312 = vmatpush2.bf16.msra.mxu0 0
  %1313 = vmatprep.subr.bf16.mxu0 0
  %1314 = vmatpush2.bf16.msra.mxu0 0
  %1315 = vmatprep.mubr.bf16.mxu0 0
  %1316 = vmatmul.mubr.bf16.gmra.mxu0 %v1278
  %v1317 = vpop.f32.mrf.mxu0
  %v1318 = vadd.f32 0.0, %v1317
  %v1319 = vpop.f32.mrf.mxu0
  %v1320 = vpop.f32.mrf.mxu0
  %v1321 = vpop.f32.mrf.mxu0
  %1322 = vdwg.mxu0
  %vm1323 = vcmp.gt.f32.partialorder %v1318, 0.0
  %v1324 = vmin.f32 %v1318, 0.0
  %v1325 = vmul.f32 %v1324, 1.442695
  %v1326 = vpow.pop %v1325
  %v1327 = vsub.f32 %v1326, 1.0
  %v1328 = vsel %vm1323, %v1318, %v1327
  %v1329 = vpack.c.bf16 %v1328, %v1328
  %s1330 = scalar_lea.vmem %s3, 192
  %v1331 = vld [vmem:[%s1330] sm:$0xf]
  %v1332 = vld [vmem:[%s1330 + $0x4] sm:$0xf]
  %v1333 = vld [vmem:[%s1330 + $0x8] sm:$0xf]
  %v1334 = vld [vmem:[%s1330 + $0xc] sm:$0xf]
  %v1335 = vld [vmem:[%s1330 + $0x10] sm:$0xf]
  %v1336 = vld [vmem:[%s1330 + $0x14] sm:$0xf]
  %v1337 = vld [vmem:[%s1330 + $0x18] sm:$0xf]
  %v1338 = vld [vmem:[%s1330 + $0x1c] sm:$0xf]
  %v1347 = vunpack.c.l.b16 %v1331
  %v1348 = vunpack.c.l.b16 %v1332
  %v1349 = vunpack.c.l.b16 %v1333
  %v1350 = vunpack.c.l.b16 %v1334
  %v1351 = vunpack.c.l.b16 %v1335
  %v1352 = vunpack.c.l.b16 %v1336
  %v1353 = vunpack.c.l.b16 %v1337
  %v1354 = vunpack.c.l.b16 %v1338
  %v1355 = vpack.c.b16 %v1348, %v1347
  %v1356 = vpack.c.b16 %v1350, %v1349
  %v1357 = vpack.c.b16 %v1352, %v1351
  %v1358 = vpack.c.b16 %v1354, %v1353
  %v1364 = vsel %vm416, %v1329, 0
  %1366 = vmatprep.subr.bf16.mxu0 0
  %1367 = vmatpush1.bf16.msra.mxu0 0
  %1368 = vmatprep.subr.bf16.mxu0 0
  %1369 = vmatpush1.bf16.msra.mxu0 0
  %1370 = vmatprep.subr.bf16.mxu0 0
  %1371 = vmatpush1.bf16.msra.mxu0 0
  %1372 = vmatprep.subr.bf16.mxu0 0
  %1373 = vmatpush1.bf16.msra.mxu0 0
  %1374 = vmatprep.subr.bf16.mxu0 0
  %1375 = vmatpush1.bf16.msra.mxu0 %v1358
  %1376 = vmatprep.subr.bf16.mxu0 0
  %1377 = vmatpush1.bf16.msra.mxu0 %v1357
  %1378 = vmatprep.subr.bf16.mxu0 0
  %1379 = vmatpush1.bf16.msra.mxu0 %v1356
  %1380 = vmatprep.subr.bf16.mxu0 0
  %1381 = vmatpush1.bf16.msra.mxu0 %v1355
  %1382 = vmatprep.subr.bf16.mxu0 0
  %1383 = vmatpush2.bf16.msra.mxu0 0
  %1384 = vmatprep.subr.bf16.mxu0 0
  %1385 = vmatpush2.bf16.msra.mxu0 0
  %1386 = vmatprep.subr.bf16.mxu0 0
  %1387 = vmatpush2.bf16.msra.mxu0 0
  %1388 = vmatprep.subr.bf16.mxu0 0
  %1389 = vmatpush2.bf16.msra.mxu0 0
  %1390 = vmatprep.subr.bf16.mxu0 0
  %1391 = vmatpush2.bf16.msra.mxu0 0
  %1392 = vmatprep.subr.bf16.mxu0 0
  %1393 = vmatpush2.bf16.msra.mxu0 0
  %1394 = vmatprep.subr.bf16.mxu0 0
  %1395 = vmatpush2.bf16.msra.mxu0 0
  %1396 = vmatprep.subr.bf16.mxu0 0
  %1397 = vmatpush2.bf16.msra.mxu0 0
  %1398 = vmatprep.mubr.bf16.mxu0 0
  %1399 = vmatmul.mubr.bf16.gmra.mxu0 %v1364
  %v1400 = vpop.f32.mrf.mxu0
  %v1401 = vadd.f32 0.0, %v1400
  %v1402 = vpop.f32.mrf.mxu0
  %v1403 = vpop.f32.mrf.mxu0
  %v1404 = vpop.f32.mrf.mxu0
  %1405 = vdwg.mxu0
  %v1406 = vadd.f32 %v1230, %v1401
  %v1407 = vpack.c.bf16 %v172, %v172
  %s1408 = scalar_lea.vmem %s2, 308
  %v1409 = vld [vmem:[%s1408] sm:$0xf]
  %v1410 = vld [vmem:[%s1408 + $0x4] sm:$0xf]
  %v1411 = vld [vmem:[%s1408 + $0x8] sm:$0xf]
  %v1412 = vld [vmem:[%s1408 + $0xc] sm:$0xf]
  %v1413 = vld [vmem:[%s1408 + $0x10] sm:$0xf]
  %v1414 = vld [vmem:[%s1408 + $0x14] sm:$0xf]
  %v1415 = vld [vmem:[%s1408 + $0x18] sm:$0xf]
  %v1416 = vld [vmem:[%s1408 + $0x1c] sm:$0xf]
  %v1417 = vld [vmem:[%s1408 + $0x20] sm:$0xf]
  %v1418 = vld [vmem:[%s1408 + $0x24] sm:$0xf]
  %v1419 = vld [vmem:[%s1408 + $0x28] sm:$0x1]
  %v1431 = vunpack.c.l.b16 %v1409
  %v1432 = vunpack.c.l.b16 %v1410
  %v1433 = vunpack.c.l.b16 %v1411
  %v1434 = vunpack.c.l.b16 %v1412
  %v1435 = vunpack.c.l.b16 %v1413
  %v1436 = vunpack.c.l.b16 %v1414
  %v1437 = vunpack.c.l.b16 %v1415
  %v1438 = vunpack.c.l.b16 %v1416
  %v1439 = vunpack.c.l.b16 %v1417
  %v1440 = vunpack.c.l.b16 %v1418
  %v1441 = vunpack.c.l.b16 %v1419
  %v1442 = vpack.c.b16 %v1432, %v1431
  %v1443 = vpack.c.b16 %v1434, %v1433
  %v1444 = vpack.c.b16 %v1436, %v1435
  %v1445 = vpack.c.b16 %v1438, %v1437
  %v1446 = vpack.c.b16 %v1440, %v1439
  %v1447 = vpack.c.b16 %v1441, %v1441
  %v1454 = vsel %vm220, %v1407, 0
  %v1457 = vand.u32 %v1447, %v225
  %1459 = vmatprep.subr.bf16.mxu0 0
  %1460 = vmatpush1.bf16.msra.mxu0 0
  %1461 = vmatprep.subr.bf16.mxu0 0
  %1462 = vmatpush1.bf16.msra.mxu0 0
  %1463 = vmatprep.subr.bf16.mxu0 0
  %1464 = vmatpush1.bf16.msra.mxu0 %v1457
  %1465 = vmatprep.subr.bf16.mxu0 0
  %1466 = vmatpush1.bf16.msra.mxu0 %v1446
  %1467 = vmatprep.subr.bf16.mxu0 0
  %1468 = vmatpush1.bf16.msra.mxu0 %v1445
  %1469 = vmatprep.subr.bf16.mxu0 0
  %1470 = vmatpush1.bf16.msra.mxu0 %v1444
  %1471 = vmatprep.subr.bf16.mxu0 0
  %1472 = vmatpush1.bf16.msra.mxu0 %v1443
  %1473 = vmatprep.subr.bf16.mxu0 0
  %1474 = vmatpush1.bf16.msra.mxu0 %v1442
  %1475 = vmatprep.subr.bf16.mxu0 0
  %1476 = vmatpush2.bf16.msra.mxu0 0
  %1477 = vmatprep.subr.bf16.mxu0 0
  %1478 = vmatpush2.bf16.msra.mxu0 0
  %1479 = vmatprep.subr.bf16.mxu0 0
  %1480 = vmatpush2.bf16.msra.mxu0 0
  %1481 = vmatprep.subr.bf16.mxu0 0
  %1482 = vmatpush2.bf16.msra.mxu0 0
  %1483 = vmatprep.subr.bf16.mxu0 0
  %1484 = vmatpush2.bf16.msra.mxu0 0
  %1485 = vmatprep.subr.bf16.mxu0 0
  %1486 = vmatpush2.bf16.msra.mxu0 0
  %1487 = vmatprep.subr.bf16.mxu0 0
  %1488 = vmatpush2.bf16.msra.mxu0 0
  %1489 = vmatprep.subr.bf16.mxu0 0
  %1490 = vmatpush2.bf16.msra.mxu0 0
  %1491 = vmatprep.mubr.bf16.mxu0 0
  %1492 = vmatmul.mubr.bf16.gmra.mxu0 %v1454
  %v1493 = vpop.f32.mrf.mxu0
  %v1494 = vadd.f32 0.0, %v1493
  %v1495 = vpop.f32.mrf.mxu0
  %v1496 = vpop.f32.mrf.mxu0
  %v1497 = vpop.f32.mrf.mxu0
  %1498 = vdwg.mxu0
  %vm1499 = vcmp.gt.f32.partialorder %v1494, 0.0
  %v1500 = vmin.f32 %v1494, 0.0
  %v1501 = vmul.f32 %v1500, 1.442695
  %v1502 = vpow.pop %v1501
  %v1503 = vsub.f32 %v1502, 1.0
  %v1504 = vsel %vm1499, %v1494, %v1503
  %v1505 = vpack.c.bf16 %v1504, %v1504
  %s1506 = scalar_lea.vmem %s3, 224
  %v1507 = vld [vmem:[%s1506] sm:$0xf]
  %v1508 = vld [vmem:[%s1506 + $0x4] sm:$0xf]
  %v1509 = vld [vmem:[%s1506 + $0x8] sm:$0xf]
  %v1510 = vld [vmem:[%s1506 + $0xc] sm:$0xf]
  %v1511 = vld [vmem:[%s1506 + $0x10] sm:$0xf]
  %v1512 = vld [vmem:[%s1506 + $0x14] sm:$0xf]
  %v1513 = vld [vmem:[%s1506 + $0x18] sm:$0xf]
  %v1514 = vld [vmem:[%s1506 + $0x1c] sm:$0xf]
  %v1523 = vunpack.c.l.b16 %v1507
  %v1524 = vunpack.c.l.b16 %v1508
  %v1525 = vunpack.c.l.b16 %v1509
  %v1526 = vunpack.c.l.b16 %v1510
  %v1527 = vunpack.c.l.b16 %v1511
  %v1528 = vunpack.c.l.b16 %v1512
  %v1529 = vunpack.c.l.b16 %v1513
  %v1530 = vunpack.c.l.b16 %v1514
  %v1531 = vpack.c.b16 %v1524, %v1523
  %v1532 = vpack.c.b16 %v1526, %v1525
  %v1533 = vpack.c.b16 %v1528, %v1527
  %v1534 = vpack.c.b16 %v1530, %v1529
  %v1540 = vsel %vm416, %v1505, 0
  %1542 = vmatprep.subr.bf16.mxu0 0
  %1543 = vmatpush1.bf16.msra.mxu0 0
  %1544 = vmatprep.subr.bf16.mxu0 0
  %1545 = vmatpush1.bf16.msra.mxu0 0
  %1546 = vmatprep.subr.bf16.mxu0 0
  %1547 = vmatpush1.bf16.msra.mxu0 0
  %1548 = vmatprep.subr.bf16.mxu0 0
  %1549 = vmatpush1.bf16.msra.mxu0 0
  %1550 = vmatprep.subr.bf16.mxu0 0
  %1551 = vmatpush1.bf16.msra.mxu0 %v1534
  %1552 = vmatprep.subr.bf16.mxu0 0
  %1553 = vmatpush1.bf16.msra.mxu0 %v1533
  %1554 = vmatprep.subr.bf16.mxu0 0
  %1555 = vmatpush1.bf16.msra.mxu0 %v1532
  %1556 = vmatprep.subr.bf16.mxu0 0
  %1557 = vmatpush1.bf16.msra.mxu0 %v1531
  %1558 = vmatprep.subr.bf16.mxu0 0
  %1559 = vmatpush2.bf16.msra.mxu0 0
  %1560 = vmatprep.subr.bf16.mxu0 0
  %1561 = vmatpush2.bf16.msra.mxu0 0
  %1562 = vmatprep.subr.bf16.mxu0 0
  %1563 = vmatpush2.bf16.msra.mxu0 0
  %1564 = vmatprep.subr.bf16.mxu0 0
  %1565 = vmatpush2.bf16.msra.mxu0 0
  %1566 = vmatprep.subr.bf16.mxu0 0
  %1567 = vmatpush2.bf16.msra.mxu0 0
  %1568 = vmatprep.subr.bf16.mxu0 0
  %1569 = vmatpush2.bf16.msra.mxu0 0
  %1570 = vmatprep.subr.bf16.mxu0 0
  %1571 = vmatpush2.bf16.msra.mxu0 0
  %1572 = vmatprep.subr.bf16.mxu0 0
  %1573 = vmatpush2.bf16.msra.mxu0 0
  %1574 = vmatprep.mubr.bf16.mxu0 0
  %1575 = vmatmul.mubr.bf16.gmra.mxu0 %v1540
  %v1576 = vpop.f32.mrf.mxu0
  %v1577 = vadd.f32 0.0, %v1576
  %v1578 = vpop.f32.mrf.mxu0
  %v1579 = vpop.f32.mrf.mxu0
  %v1580 = vpop.f32.mrf.mxu0
  %1581 = vdwg.mxu0
  %v1582 = vadd.f32 %v1406, %v1577
  %v1583 = vld [vmem:[%s4] sm:$0x1]
  %v1585 = vlaneseq
  %v1586 = vshrl.u32 %v1585, 7
  %v1587 = vsub.s32 0, %v1586
  %v1588 = vrot.slane %v1583, %v1587
  %v1590 = vadd.f32 %v1582, %v1588
  %vm1591 = vcmp.gt.f32.partialorder %v1590, 0.0
  %v1592 = vmin.f32 %v1590, 0.0
  %v1593 = vmul.f32 %v1592, 1.442695
  %v1594 = vpow.pop %v1593
  %v1595 = vsub.f32 %v1594, 1.0
  %v1596 = vsel %vm1591, %v1590, %v1595
  %v1597 = vld [vmem:[%s5] sm:$0xff]
  %v1598 = vld [vmem:[%s5 + $0x8] sm:$0xff]
  %v1599 = vld [vmem:[%s5 + $0x10] sm:$0xff]
  %v1600 = vld [vmem:[%s5 + $0x18] sm:$0xff]
  %v1601 = vld [vmem:[%s5 + $0x20] sm:$0xff]
  %v1602 = vld [vmem:[%s5 + $0x28] sm:$0xff]
  %v1603 = vld [vmem:[%s5 + $0x30] sm:$0xff]
  %v1604 = vld [vmem:[%s5 + $0x38] sm:$0xff]
  %v1605 = vld [vmem:[%s5 + $0x40] sm:$0xff]
  %v1606 = vld [vmem:[%s5 + $0x48] sm:$0xff]
  %v1607 = vld [vmem:[%s5 + $0x50] sm:$0xff]
  %v1608 = vld [vmem:[%s5 + $0x58] sm:$0xff]
  %v1609 = vld [vmem:[%s5 + $0x60] sm:$0xff]
  %v1610 = vld [vmem:[%s5 + $0x68] sm:$0xff]
  %v1611 = vld [vmem:[%s5 + $0x70] sm:$0xff]
  %v1612 = vld [vmem:[%s5 + $0x78] sm:$0xff]
  %1613 = vmatprep.subr.mxu0 0.0
  %1614 = vmatpush1.msra.mxu0 %v1612
  %1615 = vmatprep.subr.mxu0 0.0
  %1616 = vmatpush1.msra.mxu0 %v1611
  %1617 = vmatprep.subr.mxu0 0.0
  %1618 = vmatpush1.msra.mxu0 %v1610
  %1619 = vmatprep.subr.mxu0 0.0
  %1620 = vmatpush1.msra.mxu0 %v1609
  %1621 = vmatprep.subr.mxu0 0.0
  %1622 = vmatpush1.msra.mxu0 %v1608
  %1623 = vmatprep.subr.mxu0 0.0
  %1624 = vmatpush1.msra.mxu0 %v1607
  %1625 = vmatprep.subr.mxu0 0.0
  %1626 = vmatpush1.msra.mxu0 %v1606
  %1627 = vmatprep.subr.mxu0 0.0
  %1628 = vmatpush1.msra.mxu0 %v1605
  %1629 = vmatprep.subr.mxu0 0.0
  %1630 = vmatpush1.msra.mxu0 %v1604
  %1631 = vmatprep.subr.mxu0 0.0
  %1632 = vmatpush1.msra.mxu0 %v1603
  %1633 = vmatprep.subr.mxu0 0.0
  %1634 = vmatpush1.msra.mxu0 %v1602
  %1635 = vmatprep.subr.mxu0 0.0
  %1636 = vmatpush1.msra.mxu0 %v1601
  %1637 = vmatprep.subr.mxu0 0.0
  %1638 = vmatpush1.msra.mxu0 %v1600
  %1639 = vmatprep.subr.mxu0 0.0
  %1640 = vmatpush1.msra.mxu0 %v1599
  %1641 = vmatprep.subr.mxu0 0.0
  %1642 = vmatpush1.msra.mxu0 %v1598
  %1643 = vmatprep.subr.mxu0 0.0
  %1644 = vmatpush1.msra.mxu0 %v1597
  %1645 = vmatprep.subr.mxu0 0.0
  %1646 = vmatpush2.msra.mxu0 0.0
  %1647 = vmatprep.subr.mxu0 0.0
  %1648 = vmatpush2.msra.mxu0 0.0
  %1649 = vmatprep.subr.mxu0 0.0
  %1650 = vmatpush2.msra.mxu0 0.0
  %1651 = vmatprep.subr.mxu0 0.0
  %1652 = vmatpush2.msra.mxu0 0.0
  %1653 = vmatprep.subr.mxu0 0.0
  %1654 = vmatpush2.msra.mxu0 0.0
  %1655 = vmatprep.subr.mxu0 0.0
  %1656 = vmatpush2.msra.mxu0 0.0
  %1657 = vmatprep.subr.mxu0 0.0
  %1658 = vmatpush2.msra.mxu0 0.0
  %1659 = vmatprep.subr.mxu0 0.0
  %1660 = vmatpush2.msra.mxu0 0.0
  %1661 = vmatprep.subr.mxu0 0.0
  %1662 = vmatpush2.msra.mxu0 0.0
  %1663 = vmatprep.subr.mxu0 0.0
  %1664 = vmatpush2.msra.mxu0 0.0
  %1665 = vmatprep.subr.mxu0 0.0
  %1666 = vmatpush2.msra.mxu0 0.0
  %1667 = vmatprep.subr.mxu0 0.0
  %1668 = vmatpush2.msra.mxu0 0.0
  %1669 = vmatprep.subr.mxu0 0.0
  %1670 = vmatpush2.msra.mxu0 0.0
  %1671 = vmatprep.subr.mxu0 0.0
  %1672 = vmatpush2.msra.mxu0 0.0
  %1673 = vmatprep.subr.mxu0 0.0
  %1674 = vmatpush2.msra.mxu0 0.0
  %1675 = vmatprep.subr.mxu0 0.0
  %1676 = vmatpush2.msra.mxu0 0.0
  %1677 = vmatprep.mubr.f32.mxu0 0.0
  %1678 = vmatmul.mubr.f32.gmra.mxu0 %v1596
  %v1679 = vpop.f32.mrf.mxu0
  %v1680 = vadd.f32 0.0, %v1679
  %v1681 = vpop.f32.mrf.mxu0
  %1682 = vdwg.mxu0
  %v1683 = vld [vmem:[%s6] sm:$0xff]
  %v1684 = vld [vmem:[%s6 + $0x8] sm:$0xff]
  %v1685 = vld [vmem:[%s7] sm:$0x1]
  %v1687 = vlaneseq
  %v1688 = vshrl.u32 %v1687, 7
  %v1689 = vsub.s32 0, %v1688
  %v1690 = vrot.slane %v1685, %v1689
  %vm1692 = vcmask 130048
  %v1694 = vsel %vm1692, %v1680, 0
  %1696 = vmatprep.subr.mxu0 0.0
  %1697 = vmatpush1.msra.mxu0 0.0
  %1698 = vmatprep.subr.mxu0 0.0
  %1699 = vmatpush1.msra.mxu0 0.0
  %1700 = vmatprep.subr.mxu0 0.0
  %1701 = vmatpush1.msra.mxu0 0.0
  %1702 = vmatprep.subr.mxu0 0.0
  %1703 = vmatpush1.msra.mxu0 0.0
  %1704 = vmatprep.subr.mxu0 0.0
  %1705 = vmatpush1.msra.mxu0 0.0
  %1706 = vmatprep.subr.mxu0 0.0
  %1707 = vmatpush1.msra.mxu0 0.0
  %1708 = vmatprep.subr.mxu0 0.0
  %1709 = vmatpush1.msra.mxu0 0.0
  %1710 = vmatprep.subr.mxu0 0.0
  %1711 = vmatpush1.msra.mxu0 0.0
  %1712 = vmatprep.subr.mxu0 0.0
  %1713 = vmatpush1.msra.mxu0 0.0
  %1714 = vmatprep.subr.mxu0 0.0
  %1715 = vmatpush1.msra.mxu0 0.0
  %1716 = vmatprep.subr.mxu0 0.0
  %1717 = vmatpush1.msra.mxu0 0.0
  %1718 = vmatprep.subr.mxu0 0.0
  %1719 = vmatpush1.msra.mxu0 0.0
  %1720 = vmatprep.subr.mxu0 0.0
  %1721 = vmatpush1.msra.mxu0 0.0
  %1722 = vmatprep.subr.mxu0 0.0
  %1723 = vmatpush1.msra.mxu0 0.0
  %1724 = vmatprep.subr.mxu0 0.0
  %1725 = vmatpush1.msra.mxu0 %v1684
  %1726 = vmatprep.subr.mxu0 0.0
  %1727 = vmatpush1.msra.mxu0 %v1683
  %1728 = vmatprep.subr.mxu0 0.0
  %1729 = vmatpush2.msra.mxu0 0.0
  %1730 = vmatprep.subr.mxu0 0.0
  %1731 = vmatpush2.msra.mxu0 0.0
  %1732 = vmatprep.subr.mxu0 0.0
  %1733 = vmatpush2.msra.mxu0 0.0
  %1734 = vmatprep.subr.mxu0 0.0
  %1735 = vmatpush2.msra.mxu0 0.0
  %1736 = vmatprep.subr.mxu0 0.0
  %1737 = vmatpush2.msra.mxu0 0.0
  %1738 = vmatprep.subr.mxu0 0.0
  %1739 = vmatpush2.msra.mxu0 0.0
  %1740 = vmatprep.subr.mxu0 0.0
  %1741 = vmatpush2.msra.mxu0 0.0
  %1742 = vmatprep.subr.mxu0 0.0
  %1743 = vmatpush2.msra.mxu0 0.0
  %1744 = vmatprep.subr.mxu0 0.0
  %1745 = vmatpush2.msra.mxu0 0.0
  %1746 = vmatprep.subr.mxu0 0.0
  %1747 = vmatpush2.msra.mxu0 0.0
  %1748 = vmatprep.subr.mxu0 0.0
  %1749 = vmatpush2.msra.mxu0 0.0
  %1750 = vmatprep.subr.mxu0 0.0
  %1751 = vmatpush2.msra.mxu0 0.0
  %1752 = vmatprep.subr.mxu0 0.0
  %1753 = vmatpush2.msra.mxu0 0.0
  %1754 = vmatprep.subr.mxu0 0.0
  %1755 = vmatpush2.msra.mxu0 0.0
  %1756 = vmatprep.subr.mxu0 0.0
  %1757 = vmatpush2.msra.mxu0 0.0
  %1758 = vmatprep.subr.mxu0 0.0
  %1759 = vmatpush2.msra.mxu0 0.0
  %1760 = vmatprep.mubr.f32.mxu0 0.0
  %1761 = vmatmul.mubr.f32.gmra.mxu0 %v1694
  %v1762 = vpop.f32.mrf.mxu0
  %v1763 = vadd.f32 %v1690, %v1762
  %v1764 = vpop.f32.mrf.mxu0
  %1765 = vdwg.mxu0
  %v1766 = vmul.f32 %v1763, %v1763
  %1767 = vadd.xlane.f32.xlu0 %v1766
  %v1768 = vpop.xlane.xlu0 %1767
  %v1769 = vmax.f32 %v1768, 1e-24
  %v1770 = vrsqrt.pop %v1769
  %v1771 = vmul.f32 %v1763, %v1770
  %1772 = vst [vmem:[%s8] sm:$0xff] %v1771
  // Predicated region
  $region34: #{compact_eegnet_forward.1} parent=0 // pred_check
    _
  $region35: #{compact_eegnet_forward.1} parent=0 // pred_check_branch
    %1774 = sbr.rel (0) target = $region37
  $region36: #{compact_eegnet_forward.1} parent=0 // pred_region
    _
  $region37: #{compact_eegnet_forward.1} parent=0 // pred_fallthru
    _
  // Predicated region
  $region38: #{compact_eegnet_forward.1} parent=0 // pred_check
    _
  $region39: #{compact_eegnet_forward.1} parent=0 // pred_check_branch
    %1776 = sbr.rel (0) target = $region41
  $region40: #{compact_eegnet_forward.1} parent=0 // pred_region
    _
  $region41: #{compact_eegnet_forward.1} parent=0 // pred_fallthru
    _

</llo_original>
